<compile_context>
chip_gen: v5e
topology: v5e:2x2
jax: 0.10.0
libtpu: 0.0.40
codegen_flags: <defaults>
</compile_context>

<pallas_src>
import functools
import math

import jax
import jax.numpy as jnp
import numpy as np
from jax.experimental import pallas as pl
from jax.experimental.pallas import tpu as pltpu


_VMEM_SPEC = pl.BlockSpec(memory_space=pltpu.MemorySpace.VMEM)


# ----------------------------- fused Pallas kernel ---------------------------


def _make_fused_policy_kernel(num_layers):
    """Kernel: x -> [dense + bias + ReLU] * num_layers -> softmax."""

    def kernel(*refs):
        # refs = (x_ref, w_0, b_0, ..., w_{L-1}, b_{L-1}, o_ref)
        x_ref, o_ref = refs[0], refs[-1]
        h = x_ref[...].astype(jnp.float32)
        for i in range(num_layers):
            w = refs[1 + 2 * i][...].astype(jnp.float32)
            b = refs[2 + 2 * i][...].astype(jnp.float32)
            h = jnp.dot(h, w, preferred_element_type=jnp.float32) + b
            h = jnp.maximum(h, 0.0)
            # TODO(synk): F.dropout(p, training=self.training) is an exact
            # identity in inference mode (the module passes training=self.training);
            # a training-mode kernel would draw a keep-mask here with
            # pltpu.prng_seed / pltpu.prng_random_bits.
        # Fused softmax epilogue (exp / reciprocal run on the otherwise idle EUP).
        m = jnp.max(h, axis=-1, keepdims=True)
        e = jnp.exp(h - m)
        s = jnp.sum(e, axis=-1, keepdims=True)
        # approx=True would map to the fast EUP vrcp; exact kept for 1e-5 parity.
        o_ref[...] = (e * pl.reciprocal(s, approx=False)).astype(o_ref.dtype)

    return kernel


def chess_policy_forward(x_nchw, dense_params):
    """Forward pass matching ChessPolicy.forward (inference mode).

    dense_params: list of (weight, bias) with weight (Fin, Fout), bias (1, Fout).
    Conv layers must already be lowered to dense conv matrices in NCHW-flatten
    order (see prepare_dense_params); the whole stack runs in one pallas_call.
    """
    n = x_nchw.shape[0]
    x = x_nchw.reshape(n, -1)  # NCHW flatten == conv-matrix row ordering
    flat_args = []
    for w, b in dense_params:
        flat_args += [w, b]
    out_features = dense_params[-1][0].shape[1]
    kernel = _make_fused_policy_kernel(len(dense_params))
    return pl.pallas_call(
        kernel,
        out_shape=jax.ShapeDtypeStruct((n, out_features), x_nchw.dtype),
        in_specs=[_VMEM_SPEC] * (1 + len(flat_args)),
        out_specs=_VMEM_SPEC,
    )(x, *flat_args)


# ----------------------------- param lowering (one-time) ---------------------


def conv_to_dense(w_hwio, b, h_in, w_in):
    """Lower a stride-1 Conv2d (padding = ks // 2) to a dense matmul.

    Returns (mat, bias_row, h_out, w_out) such that, in NCHW-flatten order,
        conv(x) == x.reshape(N, Cin*H*W) @ mat + bias_row
    with mat[(ci,hi,wi), (co,ho,wo)] = w_hwio[hi-ho+ph, wi-wo+pw, ci, co].
    Handles even kernel sizes too (output spatial size H + 2*(ks//2) - ks + 1).
    """
    kh_n, kw_n, cin, cout = w_hwio.shape
    ph, pw = kh_n // 2, kw_n // 2
    h_out = h_in + 2 * ph - kh_n + 1
    w_out = w_in + 2 * pw - kw_n + 1
    wnp = np.asarray(w_hwio, np.float32)
    mat = np.zeros((cin, h_in, w_in, cout, h_out, w_out), np.float32)
    for kh in range(kh_n):
        for kw in range(kw_n):
            for ho in range(h_out):
                hi = ho + kh - ph
                if not 0 <= hi < h_in:
                    continue
                for wo in range(w_out):
                    wi = wo + kw - pw
                    if not 0 <= wi < w_in:
                        continue
                    mat[:, hi, wi, :, ho, wo] = wnp[kh, kw]  # (Cin, Cout) block
    mat = mat.reshape(cin * h_in * w_in, cout * h_out * w_out)
    bias_row = np.repeat(np.asarray(b, np.float32), h_out * w_out).reshape(1, -1)
    return jnp.asarray(mat), jnp.asarray(bias_row), h_out, w_out


def prepare_dense_params(conv_params, fc_params, h_in, w_in):
    """One-time lowering of torch-layout params into the fused kernel's layout."""
    dense = []
    h, w = h_in, w_in
    for cw, cb in conv_params:
        mat, bias, h, w = conv_to_dense(cw, cb, h, w)
        dense.append((mat, bias))
    for fw, fb in fc_params:
        dense.append((fw, fb.reshape(1, -1)))
    return dense


# ----------------------------- param init ------------------------------------


def kaiming_uniform(key, shape, fan_in):
    # kaiming_uniform_ with nonlinearity='relu': bound = sqrt(2) * sqrt(3/fan_in)
    bound = math.sqrt(6.0 / fan_in)
    return jax.random.uniform(key, shape, jnp.float32, -bound, bound)


def build_params(key, in_ch, out_ch, ks, fc_in, fc_out):
    conv_params = []
    for i in range(len(in_ch)):
        key, kw = jax.random.split(key)
        fan_in = in_ch[i] * ks[i] * ks[i]
        w = kaiming_uniform(kw, (ks[i], ks[i], in_ch[i], out_ch[i]), fan_in)
        b = jnp.zeros((out_ch[i],), jnp.float32)
        conv_params.append((w, b))
    fc_params = []
    for i in range(len(fc_in)):
        key, kw = jax.random.split(key)
        w = kaiming_uniform(kw, (fc_in[i], fc_out[i]), fc_in[i])
        b = jnp.zeros((fc_out[i],), jnp.float32)
        fc_params.append((w, b))
    return conv_params, fc_params


# ----------------------------- reference (pure JAX) ---------------------------


def reference_forward(x_nchw, conv_params, fc_params):
    x = jnp.transpose(x_nchw, (0, 2, 3, 1))
    for (w, b) in conv_params:
        ph, pw = w.shape[0] // 2, w.shape[1] // 2
        y = jax.lax.conv_general_dilated(
            x, w, window_strides=(1, 1), padding=[(ph, ph), (pw, pw)],
            dimension_numbers=("NHWC", "HWIO", "NHWC"))
        x = jax.nn.relu(y + b)
    n = x.shape[0]
    x = jnp.transpose(x, (0, 3, 1, 2)).reshape(n, -1)
    for (w, b) in fc_params:
        x = jax.nn.relu(x @ w + b)
    return jax.nn.softmax(x, axis=-1)


# ----------------------------- main -------------------------------------------


if __name__ == "__main__":
    key = jax.random.PRNGKey(0)

    # Small configuration consistent with the module's constructor.
    N, H, W = 2, 8, 8                      # chess-board-like spatial extent
    in_channels_list = [4, 8]
    out_channels_list = [8, 16]
    kernel_size_list = [3, 3]
    fc_in_features_list = [out_channels_list[-1] * H * W, 64]   # [1024, 64]
    fc_out_features_list = [64, 32]

    key, kx, kp = jax.random.split(key, 3)
    x = jax.random.normal(kx, (N, in_channels_list[0], H, W), jnp.float32)  # NCHW

    conv_params, fc_params = build_params(
        kp, in_channels_list, out_channels_list, kernel_size_list,
        fc_in_features_list, fc_out_features_list)

    # One-time lowering: conv weights -> dense conv matrices (NCHW-flatten order).
    dense_params = prepare_dense_params(conv_params, fc_params, H, W)
    assert dense_params[len(conv_params) - 1][0].shape[1] == fc_in_features_list[0]

    fwd = jax.jit(functools.partial(chess_policy_forward, dense_params=dense_params))
    out = jax.block_until_ready(fwd(x))

    ref = reference_forward(x, conv_params, fc_params)
    assert out.shape == (N, fc_out_features_list[-1])
    assert jnp.allclose(jnp.sum(out, axis=-1), 1.0, atol=1e-5)
    assert jnp.allclose(out, ref, rtol=1e-5, atol=1e-5), "mismatch vs reference"

    print("KERNEL_OK")
</pallas_src>

<mosaic_0001>
module attributes {stable_mosaic.version = 11 : i64} {
  func.func @kernel(%arg0: memref<2x256xf32, #tpu.memory_space<vmem>>, %arg1: memref<256x512xf32, #tpu.memory_space<vmem>>, %arg2: memref<1x512xf32, #tpu.memory_space<vmem>>, %arg3: memref<512x1024xf32, #tpu.memory_space<vmem>>, %arg4: memref<1x1024xf32, #tpu.memory_space<vmem>>, %arg5: memref<1024x64xf32, #tpu.memory_space<vmem>>, %arg6: memref<1x64xf32, #tpu.memory_space<vmem>>, %arg7: memref<64x32xf32, #tpu.memory_space<vmem>>, %arg8: memref<1x32xf32, #tpu.memory_space<vmem>>, %arg9: memref<2x32xf32, #tpu.memory_space<vmem>>) attributes {dimension_semantics = [], scalar_prefetch = 0 : i64, scratch_operands = 0 : i64, tpu.core_type = #tpu.core_type<tc>} {
    %c0 = arith.constant 0 : index
    %c0_0 = arith.constant 0 : index
    %0 = vector.load %arg0[%c0, %c0_0] : memref<2x256xf32, #tpu.memory_space<vmem>>, vector<2x256xf32>
    %c0_1 = arith.constant 0 : index
    %c0_2 = arith.constant 0 : index
    %1 = vector.load %arg1[%c0_1, %c0_2] : memref<256x512xf32, #tpu.memory_space<vmem>>, vector<256x512xf32>
    %c0_3 = arith.constant 0 : index
    %c0_4 = arith.constant 0 : index
    %2 = vector.load %arg2[%c0_3, %c0_4] : memref<1x512xf32, #tpu.memory_space<vmem>>, vector<1x512xf32>
    %cst = arith.constant dense<0.000000e+00> : vector<2x512xf32>
    %3 = tpu.matmul %0, %1, %cst {dimension_numbers = #tpu.dot_dimension_numbers<[1], [0], [0], [1], [0, 0, 1, 1], [], []>} : vector<2x256xf32>, vector<256x512xf32>, vector<2x512xf32> -> vector<2x512xf32>
    %4 = vector.broadcast %2 : vector<1x512xf32> to vector<2x512xf32>
    %5 = arith.addf %3, %4 : vector<2x512xf32>
    %cst_5 = arith.constant 0.000000e+00 : f32
    %6 = vector.broadcast %cst_5 : f32 to vector<2x512xf32>
    %7 = arith.maximumf %5, %6 : vector<2x512xf32>
    %c0_6 = arith.constant 0 : index
    %c0_7 = arith.constant 0 : index
    %8 = vector.load %arg3[%c0_6, %c0_7] : memref<512x1024xf32, #tpu.memory_space<vmem>>, vector<512x1024xf32>
    %c0_8 = arith.constant 0 : index
    %c0_9 = arith.constant 0 : index
    %9 = vector.load %arg4[%c0_8, %c0_9] : memref<1x1024xf32, #tpu.memory_space<vmem>>, vector<1x1024xf32>
    %cst_10 = arith.constant dense<0.000000e+00> : vector<2x1024xf32>
    %10 = tpu.matmul %7, %8, %cst_10 {dimension_numbers = #tpu.dot_dimension_numbers<[1], [0], [0], [1], [0, 0, 1, 1], [], []>} : vector<2x512xf32>, vector<512x1024xf32>, vector<2x1024xf32> -> vector<2x1024xf32>
    %11 = vector.broadcast %9 : vector<1x1024xf32> to vector<2x1024xf32>
    %12 = arith.addf %10, %11 : vector<2x1024xf32>
    %cst_11 = arith.constant 0.000000e+00 : f32
    %13 = vector.broadcast %cst_11 : f32 to vector<2x1024xf32>
    %14 = arith.maximumf %12, %13 : vector<2x1024xf32>
    %c0_12 = arith.constant 0 : index
    %c0_13 = arith.constant 0 : index
    %15 = vector.load %arg5[%c0_12, %c0_13] : memref<1024x64xf32, #tpu.memory_space<vmem>>, vector<1024x64xf32>
    %c0_14 = arith.constant 0 : index
    %c0_15 = arith.constant 0 : index
    %16 = vector.load %arg6[%c0_14, %c0_15] : memref<1x64xf32, #tpu.memory_space<vmem>>, vector<1x64xf32>
    %cst_16 = arith.constant dense<0.000000e+00> : vector<2x64xf32>
    %17 = tpu.matmul %14, %15, %cst_16 {dimension_numbers = #tpu.dot_dimension_numbers<[1], [0], [0], [1], [0, 0, 1, 1], [], []>} : vector<2x1024xf32>, vector<1024x64xf32>, vector<2x64xf32> -> vector<2x64xf32>
    %18 = vector.broadcast %16 : vector<1x64xf32> to vector<2x64xf32>
    %19 = arith.addf %17, %18 : vector<2x64xf32>
    %cst_17 = arith.constant 0.000000e+00 : f32
    %20 = vector.broadcast %cst_17 : f32 to vector<2x64xf32>
    %21 = arith.maximumf %19, %20 : vector<2x64xf32>
    %c0_18 = arith.constant 0 : index
    %c0_19 = arith.constant 0 : index
    %22 = vector.load %arg7[%c0_18, %c0_19] : memref<64x32xf32, #tpu.memory_space<vmem>>, vector<64x32xf32>
    %c0_20 = arith.constant 0 : index
    %c0_21 = arith.constant 0 : index
    %23 = vector.load %arg8[%c0_20, %c0_21] : memref<1x32xf32, #tpu.memory_space<vmem>>, vector<1x32xf32>
    %cst_22 = arith.constant dense<0.000000e+00> : vector<2x32xf32>
    %24 = tpu.matmul %21, %22, %cst_22 {dimension_numbers = #tpu.dot_dimension_numbers<[1], [0], [0], [1], [0, 0, 1, 1], [], []>} : vector<2x64xf32>, vector<64x32xf32>, vector<2x32xf32> -> vector<2x32xf32>
    %25 = vector.broadcast %23 : vector<1x32xf32> to vector<2x32xf32>
    %26 = arith.addf %24, %25 : vector<2x32xf32>
    %cst_23 = arith.constant 0.000000e+00 : f32
    %27 = vector.broadcast %cst_23 : f32 to vector<2x32xf32>
    %28 = arith.maximumf %26, %27 : vector<2x32xf32>
    %cst_24 = arith.constant dense<0xFF800000> : vector<2xf32>
    %29 = vector.multi_reduction <maximumf>, %28, %cst_24 [1] : vector<2x32xf32> to vector<2xf32>
    %30 = vector.shape_cast %29 : vector<2xf32> to vector<2x1xf32>
    %31 = vector.broadcast %30 : vector<2x1xf32> to vector<2x32xf32>
    %32 = arith.subf %28, %31 : vector<2x32xf32>
    %33 = math.exp %32 : vector<2x32xf32>
    %cst_25 = arith.constant dense<0.000000e+00> : vector<2xf32>
    %34 = vector.multi_reduction <add>, %33, %cst_25 [1] : vector<2x32xf32> to vector<2xf32>
    %35 = vector.shape_cast %34 : vector<2xf32> to vector<2x1xf32>
    %36 = tpu.reciprocal %35 : vector<2x1xf32> -> vector<2x1xf32>
    %37 = vector.broadcast %36 : vector<2x1xf32> to vector<2x32xf32>
    %38 = arith.mulf %33, %37 : vector<2x32xf32>
    %c0_26 = arith.constant 0 : index
    %c0_27 = arith.constant 0 : index
    %39 = vector.load %arg9[%c0_26, %c0_27] : memref<2x32xf32, #tpu.memory_space<vmem>>, vector<2x32xf32>
    tpu.vector_store %arg9[%c0_26, %c0_27], %38 {strides = array<i32>} : memref<2x32xf32, #tpu.memory_space<vmem>>, vector<2x32xf32>,
    return
  }
}

</mosaic_0001>

<llo_original>
// kernel: chess_policy_forward.1
$region0: #{chess_policy_forward.1}
  #allocation0 [shape = 'u32[]', space=smem, size = 0x4, offset = 0x4, fixed_abs, tag = 'smem constant byte address 0x4 - core index']
  #allocation1 [shape = 'u32[72,128]{1,0:T(1,128)}', space=vmem, size = 0x9000, scoped, tag = 'internal scratch']
  %s0 = inlined_call_operand.vmem [shape: f32[2,256], index: 0, kind: input, shape index: {}]
  %s1 = inlined_call_operand.hbm [shape: f32[256,512], index: 1, kind: input, shape index: {}]
  %s2 = inlined_call_operand.vmem [shape: f32[1,512], index: 2, kind: input, shape index: {}]
  %s3 = inlined_call_operand.hbm [shape: f32[512,1024], index: 3, kind: input, shape index: {}]
  %s4 = inlined_call_operand.vmem [shape: f32[1,1024], index: 4, kind: input, shape index: {}]
  %s5 = inlined_call_operand.hbm [shape: f32[1024,64], index: 5, kind: input, shape index: {}]
  %s6 = inlined_call_operand.vmem [shape: f32[1,64], index: 6, kind: input, shape index: {}]
  %s7 = inlined_call_operand.hbm [shape: f32[64,32], index: 7, kind: input, shape index: {}]
  %s8 = inlined_call_operand.vmem [shape: f32[1,32], index: 8, kind: input, shape index: {}]
  %s9 = inlined_call_operand.hbm [shape: f32[2,32], index: 9, kind: output, shape index: {}]
  %s10 = sld [smem:[#allocation0]]
  $region62: #{chess_policy_forward.1} parent=0
    _
  %s12 = ssub.s32 1, %s10
  %s13 = scalar_select 0, %s12, %s10
  $region1: #{chess_policy_forward.1} parent=0
    #allocation2 [shape = 'u8[524288]{0}', space=vmem, size = 0x80000, scoped, tag = 'input window, operand 1, single buffered']
    #allocation3 [shape = 's32[1]{0}', space=sflag, size = 0x4, scoped, tag = 'scoped memory for chess_policy_forward.1']
    #allocation4 [shape = 's32[1]{0}', space=sflag, size = 0x4, scoped, tag = 'scoped memory for chess_policy_forward.1']
    #allocation5 [shape = 'u8[2097152]{0}', space=vmem, size = 0x200000, scoped, tag = 'input window, operand 3, single buffered']
    #allocation6 [shape = 's32[1]{0}', space=sflag, size = 0x4, scoped, tag = 'scoped memory for chess_policy_forward.1']
    #allocation7 [shape = 'u8[524288]{0}', space=vmem, size = 0x80000, scoped, tag = 'input window, operand 5, single buffered']
    #allocation8 [shape = 'u8[32768]{0}', space=vmem, size = 0x8000, scoped, tag = 'input window, operand 7, single buffered']
    #allocation9 [shape = 's32[1]{0}', space=sflag, size = 0x4, scoped, tag = 'scoped memory for chess_policy_forward.1']
    #allocation10 [shape = 'u8[1024]{0}', space=vmem, size = 0x400, scoped, tag = 'output window, operand 0, single buffered']
    %14 = vsyncpa [#allocation3], 0
    %15 = vsyncpa [#allocation6], 0
    %16 = vsyncpa [#allocation9], 0
    %17 = vsyncpa [#allocation4], 0
    // Predicated region
    $region2: #{chess_policy_forward.1} parent=1 // pred_check
      _
    $region3: #{chess_policy_forward.1} parent=1 // pred_check_branch
      %19 = sbr.rel (0) target = $region5
    $region4: #{chess_policy_forward.1} parent=1 // pred_region
      _
    $region5: #{chess_policy_forward.1} parent=1 // pred_fallthru
      _
    // Predicated region
    $region6: #{chess_policy_forward.1} parent=1 // pred_check
      _
    $region7: #{chess_policy_forward.1} parent=1 // pred_check_branch
      %21 = sbr.rel (0) target = $region9
    $region8: #{chess_policy_forward.1} parent=1 // pred_region
      %23 = vsyncadd [#allocation3], 0
      %s24 = sshll.u32 %s1, 4
      %s25 = int_to_ptr.hbm [resolvable:$true] %s24
      %s26 = sshll.u32 [#allocation2], 4
      %s27 = int_to_ptr.vmem [resolvable:$true] %s26
      %32 = dma.hbm_to_vmem [thread:$0]  %s25, 16384, %s27, [#allocation3], 512, 512, 32
    $region9: #{chess_policy_forward.1} parent=1 // pred_fallthru
      _
    // Predicated region
    $region10: #{chess_policy_forward.1} parent=1 // pred_check
      _
    $region11: #{chess_policy_forward.1} parent=1 // pred_check_branch
      %34 = sbr.rel (0) target = $region13
    $region12: #{chess_policy_forward.1} parent=1 // pred_region
      _
    $region13: #{chess_policy_forward.1} parent=1 // pred_fallthru
      _
    // Predicated region
    $region14: #{chess_policy_forward.1} parent=1 // pred_check
      _
    $region15: #{chess_policy_forward.1} parent=1 // pred_check_branch
      %36 = sbr.rel (0) target = $region17
    $region16: #{chess_policy_forward.1} parent=1 // pred_region
      %38 = vsyncadd [#allocation6], 0
      %s39 = sshll.u32 %s3, 4
      %s40 = int_to_ptr.hbm [resolvable:$true] %s39
      %s41 = sshll.u32 [#allocation5], 4
      %s42 = int_to_ptr.vmem [resolvable:$true] %s41
      %47 = dma.hbm_to_vmem [thread:$0]  %s40, 65536, %s42, [#allocation6], 1024, 1024, 64
    $region17: #{chess_policy_forward.1} parent=1 // pred_fallthru
      _
    // Predicated region
    $region18: #{chess_policy_forward.1} parent=1 // pred_check
      _
    $region19: #{chess_policy_forward.1} parent=1 // pred_check_branch
      %49 = sbr.rel (0) target = $region21
    $region20: #{chess_policy_forward.1} parent=1 // pred_region
      _
    $region21: #{chess_policy_forward.1} parent=1 // pred_fallthru
      _
    // Predicated region
    $region22: #{chess_policy_forward.1} parent=1 // pred_check
      _
    $region23: #{chess_policy_forward.1} parent=1 // pred_check_branch
      %51 = sbr.rel (0) target = $region25
    $region24: #{chess_policy_forward.1} parent=1 // pred_region
      %53 = vsyncadd [#allocation6], 0
      %s54 = sshll.u32 %s5, 4
      %s55 = int_to_ptr.hbm [resolvable:$true] %s54
      %s56 = sshll.u32 [#allocation7], 4
      %s57 = int_to_ptr.vmem [resolvable:$true] %s56
      %62 = dma.hbm_to_vmem [thread:$0]  %s55, 16384, %s57, [#allocation6], 128, 128, 8
    $region25: #{chess_policy_forward.1} parent=1 // pred_fallthru
      _
    // Predicated region
    $region26: #{chess_policy_forward.1} parent=1 // pred_check
      _
    $region27: #{chess_policy_forward.1} parent=1 // pred_check_branch
      %64 = sbr.rel (0) target = $region29
    $region28: #{chess_policy_forward.1} parent=1 // pred_region
      _
    $region29: #{chess_policy_forward.1} parent=1 // pred_fallthru
      _
    // Predicated region
    $region30: #{chess_policy_forward.1} parent=1 // pred_check
      _
    $region31: #{chess_policy_forward.1} parent=1 // pred_check_branch
      %66 = sbr.rel (0) target = $region33
    $region32: #{chess_policy_forward.1} parent=1 // pred_region
      %68 = vsyncadd [#allocation9], 0
      %s69 = sshll.u32 %s7, 4
      %s70 = int_to_ptr.hbm [resolvable:$true] %s69
      %s71 = sshll.u32 [#allocation8], 4
      %s72 = int_to_ptr.vmem [resolvable:$true] %s71
      %77 = dma.hbm_to_vmem [thread:$0]  %s70, 1024, %s72, [#allocation9], 128, 128, 8
    $region33: #{chess_policy_forward.1} parent=1 // pred_fallthru
      _
    // Predicated region
    $region34: #{chess_policy_forward.1} parent=1 // pred_check
      _
    $region35: #{chess_policy_forward.1} parent=1 // pred_check_branch
      %79 = sbr.rel (0) target = $region37
    $region36: #{chess_policy_forward.1} parent=1 // pred_region
      _
    $region37: #{chess_policy_forward.1} parent=1 // pred_fallthru
      _
    // Predicated region
    $region38: #{chess_policy_forward.1} parent=1 // pred_check
      _
    $region39: #{chess_policy_forward.1} parent=1 // pred_check_branch
      %81 = sbr.rel (0) target = $region41
    $region40: #{chess_policy_forward.1} parent=1 // pred_region
      %83 = dma.done [#allocation3], 16384
    $region41: #{chess_policy_forward.1} parent=1 // pred_fallthru
      _
    // Predicated region
    $region42: #{chess_policy_forward.1} parent=1 // pred_check
      _
    $region43: #{chess_policy_forward.1} parent=1 // pred_check_branch
      %85 = sbr.rel (0) target = $region45
    $region44: #{chess_policy_forward.1} parent=1 // pred_region
      %87 = dma.done [#allocation6], 65536
    $region45: #{chess_policy_forward.1} parent=1 // pred_fallthru
      _
    // Predicated region
    $region46: #{chess_policy_forward.1} parent=1 // pred_check
      _
    $region47: #{chess_policy_forward.1} parent=1 // pred_check_branch
      %89 = sbr.rel (0) target = $region49
    $region48: #{chess_policy_forward.1} parent=1 // pred_region
      %91 = dma.done [#allocation6], 16384
    $region49: #{chess_policy_forward.1} parent=1 // pred_fallthru
      _
    // Predicated region
    $region50: #{chess_policy_forward.1} parent=1 // pred_check
      _
    $region51: #{chess_policy_forward.1} parent=1 // pred_check_branch
      %93 = sbr.rel (0) target = $region53
    $region52: #{chess_policy_forward.1} parent=1 // pred_region
      %95 = dma.done [#allocation9], 1024
    $region53: #{chess_policy_forward.1} parent=1 // pred_fallthru
      _
    %v96 = vld [vmem:[%s0] sm:$0xf]
    %v97 = vld [vmem:[#allocation2] sm:$0xff]
    %v98 = vld [vmem:[#allocation2 + $0x8] sm:$0xff]
    %v99 = vld [vmem:[#allocation2 + $0x10] sm:$0xff]
    %v100 = vld [vmem:[#allocation2 + $0x18] sm:$0xff]
    %v101 = vld [vmem:[#allocation2 + $0x20] sm:$0xff]
    %v102 = vld [vmem:[#allocation2 + $0x28] sm:$0xff]
    %v103 = vld [vmem:[#allocation2 + $0x30] sm:$0xff]
    %v104 = vld [vmem:[#allocation2 + $0x38] sm:$0xff]
    %v105 = vld [vmem:[#allocation2 + $0x40] sm:$0xff]
    %v106 = vld [vmem:[#allocation2 + $0x48] sm:$0xff]
    %v107 = vld [vmem:[#allocation2 + $0x50] sm:$0xff]
    %v108 = vld [vmem:[#allocation2 + $0x58] sm:$0xff]
    %v109 = vld [vmem:[#allocation2 + $0x60] sm:$0xff]
    %v110 = vld [vmem:[#allocation2 + $0x68] sm:$0xff]
    %v111 = vld [vmem:[#allocation2 + $0x70] sm:$0xff]
    %v112 = vld [vmem:[#allocation2 + $0x78] sm:$0xff]
    %v113 = vld [vmem:[#allocation2 + $0x80] sm:$0xff]
    %v114 = vld [vmem:[#allocation2 + $0x88] sm:$0xff]
    %v115 = vld [vmem:[#allocation2 + $0x90] sm:$0xff]
    %v116 = vld [vmem:[#allocation2 + $0x98] sm:$0xff]
    %v117 = vld [vmem:[#allocation2 + $0xa0] sm:$0xff]
    %v118 = vld [vmem:[#allocation2 + $0xa8] sm:$0xff]
    %v119 = vld [vmem:[#allocation2 + $0xb0] sm:$0xff]
    %v120 = vld [vmem:[#allocation2 + $0xb8] sm:$0xff]
    %v121 = vld [vmem:[#allocation2 + $0xc0] sm:$0xff]
    %v122 = vld [vmem:[#allocation2 + $0xc8] sm:$0xff]
    %v123 = vld [vmem:[#allocation2 + $0xd0] sm:$0xff]
    %v124 = vld [vmem:[#allocation2 + $0xd8] sm:$0xff]
    %v125 = vld [vmem:[#allocation2 + $0xe0] sm:$0xff]
    %v126 = vld [vmem:[#allocation2 + $0xe8] sm:$0xff]
    %v127 = vld [vmem:[#allocation2 + $0xf0] sm:$0xff]
    %v128 = vld [vmem:[#allocation2 + $0xf8] sm:$0xff]
    %v129 = vld [vmem:[#allocation2 + $0x100] sm:$0xff]
    %v130 = vld [vmem:[#allocation2 + $0x108] sm:$0xff]
    %v131 = vld [vmem:[#allocation2 + $0x110] sm:$0xff]
    %v132 = vld [vmem:[#allocation2 + $0x118] sm:$0xff]
    %v133 = vld [vmem:[#allocation2 + $0x120] sm:$0xff]
    %v134 = vld [vmem:[#allocation2 + $0x128] sm:$0xff]
    %v135 = vld [vmem:[#allocation2 + $0x130] sm:$0xff]
    %v136 = vld [vmem:[#allocation2 + $0x138] sm:$0xff]
    %v137 = vld [vmem:[#allocation2 + $0x140] sm:$0xff]
    %v138 = vld [vmem:[#allocation2 + $0x148] sm:$0xff]
    %v139 = vld [vmem:[#allocation2 + $0x150] sm:$0xff]
    %v140 = vld [vmem:[#allocation2 + $0x158] sm:$0xff]
    %v141 = vld [vmem:[#allocation2 + $0x160] sm:$0xff]
    %v142 = vld [vmem:[#allocation2 + $0x168] sm:$0xff]
    %v143 = vld [vmem:[#allocation2 + $0x170] sm:$0xff]
    %v144 = vld [vmem:[#allocation2 + $0x178] sm:$0xff]
    %v145 = vld [vmem:[#allocation2 + $0x180] sm:$0xff]
    %v146 = vld [vmem:[#allocation2 + $0x188] sm:$0xff]
    %v147 = vld [vmem:[#allocation2 + $0x190] sm:$0xff]
    %v148 = vld [vmem:[#allocation2 + $0x198] sm:$0xff]
    %v149 = vld [vmem:[#allocation2 + $0x1a0] sm:$0xff]
    %v150 = vld [vmem:[#allocation2 + $0x1a8] sm:$0xff]
    %v151 = vld [vmem:[#allocation2 + $0x1b0] sm:$0xff]
    %v152 = vld [vmem:[#allocation2 + $0x1b8] sm:$0xff]
    %v153 = vld [vmem:[#allocation2 + $0x1c0] sm:$0xff]
    %v154 = vld [vmem:[#allocation2 + $0x1c8] sm:$0xff]
    %v155 = vld [vmem:[#allocation2 + $0x1d0] sm:$0xff]
    %v156 = vld [vmem:[#allocation2 + $0x1d8] sm:$0xff]
    %v157 = vld [vmem:[#allocation2 + $0x1e0] sm:$0xff]
    %v158 = vld [vmem:[#allocation2 + $0x1e8] sm:$0xff]
    %v159 = vld [vmem:[#allocation2 + $0x1f0] sm:$0xff]
    %v160 = vld [vmem:[#allocation2 + $0x1f8] sm:$0xff]
    %v161 = vld [vmem:[#allocation2 + $0x200] sm:$0xff]
    %v162 = vld [vmem:[#allocation2 + $0x208] sm:$0xff]
    %v163 = vld [vmem:[#allocation2 + $0x210] sm:$0xff]
    %v164 = vld [vmem:[#allocation2 + $0x218] sm:$0xff]
    %v165 = vld [vmem:[#allocation2 + $0x220] sm:$0xff]
    %v166 = vld [vmem:[#allocation2 + $0x228] sm:$0xff]
    %v167 = vld [vmem:[#allocation2 + $0x230] sm:$0xff]
    %v168 = vld [vmem:[#allocation2 + $0x238] sm:$0xff]
    %v169 = vld [vmem:[#allocation2 + $0x240] sm:$0xff]
    %v170 = vld [vmem:[#allocation2 + $0x248] sm:$0xff]
    %v171 = vld [vmem:[#allocation2 + $0x250] sm:$0xff]
    %v172 = vld [vmem:[#allocation2 + $0x258] sm:$0xff]
    %v173 = vld [vmem:[#allocation2 + $0x260] sm:$0xff]
    %v174 = vld [vmem:[#allocation2 + $0x268] sm:$0xff]
    %v175 = vld [vmem:[#allocation2 + $0x270] sm:$0xff]
    %v176 = vld [vmem:[#allocation2 + $0x278] sm:$0xff]
    %v177 = vld [vmem:[#allocation2 + $0x280] sm:$0xff]
    %v178 = vld [vmem:[#allocation2 + $0x288] sm:$0xff]
    %v179 = vld [vmem:[#allocation2 + $0x290] sm:$0xff]
    %v180 = vld [vmem:[#allocation2 + $0x298] sm:$0xff]
    %v181 = vld [vmem:[#allocation2 + $0x2a0] sm:$0xff]
    %v182 = vld [vmem:[#allocation2 + $0x2a8] sm:$0xff]
    %v183 = vld [vmem:[#allocation2 + $0x2b0] sm:$0xff]
    %v184 = vld [vmem:[#allocation2 + $0x2b8] sm:$0xff]
    %v185 = vld [vmem:[#allocation2 + $0x2c0] sm:$0xff]
    %v186 = vld [vmem:[#allocation2 + $0x2c8] sm:$0xff]
    %v187 = vld [vmem:[#allocation2 + $0x2d0] sm:$0xff]
    %v188 = vld [vmem:[#allocation2 + $0x2d8] sm:$0xff]
    %v189 = vld [vmem:[#allocation2 + $0x2e0] sm:$0xff]
    %v190 = vld [vmem:[#allocation2 + $0x2e8] sm:$0xff]
    %v191 = vld [vmem:[#allocation2 + $0x2f0] sm:$0xff]
    %v192 = vld [vmem:[#allocation2 + $0x2f8] sm:$0xff]
    %v193 = vld [vmem:[#allocation2 + $0x300] sm:$0xff]
    %v194 = vld [vmem:[#allocation2 + $0x308] sm:$0xff]
    %v195 = vld [vmem:[#allocation2 + $0x310] sm:$0xff]
    %v196 = vld [vmem:[#allocation2 + $0x318] sm:$0xff]
    %v197 = vld [vmem:[#allocation2 + $0x320] sm:$0xff]
    %v198 = vld [vmem:[#allocation2 + $0x328] sm:$0xff]
    %v199 = vld [vmem:[#allocation2 + $0x330] sm:$0xff]
    %v200 = vld [vmem:[#allocation2 + $0x338] sm:$0xff]
    %v201 = vld [vmem:[#allocation2 + $0x340] sm:$0xff]
    %v202 = vld [vmem:[#allocation2 + $0x348] sm:$0xff]
    %v203 = vld [vmem:[#allocation2 + $0x350] sm:$0xff]
    %v204 = vld [vmem:[#allocation2 + $0x358] sm:$0xff]
    %v205 = vld [vmem:[#allocation2 + $0x360] sm:$0xff]
    %v206 = vld [vmem:[#allocation2 + $0x368] sm:$0xff]
    %v207 = vld [vmem:[#allocation2 + $0x370] sm:$0xff]
    %v208 = vld [vmem:[#allocation2 + $0x378] sm:$0xff]
    %v209 = vld [vmem:[#allocation2 + $0x380] sm:$0xff]
    %v210 = vld [vmem:[#allocation2 + $0x388] sm:$0xff]
    %v211 = vld [vmem:[#allocation2 + $0x390] sm:$0xff]
    %v212 = vld [vmem:[#allocation2 + $0x398] sm:$0xff]
    %v213 = vld [vmem:[#allocation2 + $0x3a0] sm:$0xff]
    %v214 = vld [vmem:[#allocation2 + $0x3a8] sm:$0xff]
    %v215 = vld [vmem:[#allocation2 + $0x3b0] sm:$0xff]
    %v216 = vld [vmem:[#allocation2 + $0x3b8] sm:$0xff]
    %v217 = vld [vmem:[#allocation2 + $0x3c0] sm:$0xff]
    %v218 = vld [vmem:[#allocation2 + $0x3c8] sm:$0xff]
    %v219 = vld [vmem:[#allocation2 + $0x3d0] sm:$0xff]
    %v220 = vld [vmem:[#allocation2 + $0x3d8] sm:$0xff]
    %v221 = vld [vmem:[#allocation2 + $0x3e0] sm:$0xff]
    %v222 = vld [vmem:[#allocation2 + $0x3e8] sm:$0xff]
    %v223 = vld [vmem:[#allocation2 + $0x3f0] sm:$0xff]
    %v224 = vld [vmem:[#allocation2 + $0x3f8] sm:$0xff]
    %v225 = vld [vmem:[%s2] sm:$0xf]
    %v227 = vperm.slane %v225, 0
    %v228 = vperm.slane %v225, 1
    %v229 = vperm.slane %v225, 2
    %v230 = vperm.slane %v225, 3
    %236 = vst [vmem:[#allocation1] ss:$4 sm:$0xff] %v96
    %v237 = vld.sshfl [vmem:[#allocation1] sm:$0xff pattern:$0x73625140]
    %v238 = vld.sshfl [vmem:[#allocation1 + $0x8] sm:$0xff pattern:$0x73625140]
    %241 = vmatpush.msra.mxu0 %v157
    %242 = vmatpush.msra.mxu0 %v153
    %243 = vmatpush.msra.mxu0 %v149
    %244 = vmatpush.msra.mxu0 %v145
    %245 = vmatpush.msra.mxu0 %v141
    %246 = vmatpush.msra.mxu0 %v137
    %247 = vmatpush.msra.mxu0 %v133
    %248 = vmatpush.msra.mxu0 %v129
    %249 = vmatpush.msra.mxu0 %v125
    %250 = vmatpush.msra.mxu0 %v121
    %251 = vmatpush.msra.mxu0 %v117
    %252 = vmatpush.msra.mxu0 %v113
    %253 = vmatpush.msra.mxu0 %v109
    %254 = vmatpush.msra.mxu0 %v105
    %255 = vmatpush.msra.mxu0 %v101
    %256 = vmatpush.msra.mxu0 %v97
    %257 = vmatmul.f32.gmra.mxu0 %v237
    %v258 = vpop.f32.mrf.mxu0
    %v259 = vadd.f32 %v227, %v258
    %260 = vdwg.mxu0
    %261 = vmatpush.msra.mxu0 %v221
    %262 = vmatpush.msra.mxu0 %v217
    %263 = vmatpush.msra.mxu0 %v213
    %264 = vmatpush.msra.mxu0 %v209
    %265 = vmatpush.msra.mxu0 %v205
    %266 = vmatpush.msra.mxu0 %v201
    %267 = vmatpush.msra.mxu0 %v197
    %268 = vmatpush.msra.mxu0 %v193
    %269 = vmatpush.msra.mxu0 %v189
    %270 = vmatpush.msra.mxu0 %v185
    %271 = vmatpush.msra.mxu0 %v181
    %272 = vmatpush.msra.mxu0 %v177
    %273 = vmatpush.msra.mxu0 %v173
    %274 = vmatpush.msra.mxu0 %v169
    %275 = vmatpush.msra.mxu0 %v165
    %276 = vmatpush.msra.mxu0 %v161
    %277 = vmatmul.f32.gmra.mxu0 %v238
    %v278 = vpop.f32.mrf.mxu0
    %v279 = vadd.f32 %v259, %v278
    %280 = vdwg.mxu0
    %281 = vmatpush.msra.mxu0 %v158
    %282 = vmatpush.msra.mxu0 %v154
    %283 = vmatpush.msra.mxu0 %v150
    %284 = vmatpush.msra.mxu0 %v146
    %285 = vmatpush.msra.mxu0 %v142
    %286 = vmatpush.msra.mxu0 %v138
    %287 = vmatpush.msra.mxu0 %v134
    %288 = vmatpush.msra.mxu0 %v130
    %289 = vmatpush.msra.mxu0 %v126
    %290 = vmatpush.msra.mxu0 %v122
    %291 = vmatpush.msra.mxu0 %v118
    %292 = vmatpush.msra.mxu0 %v114
    %293 = vmatpush.msra.mxu0 %v110
    %294 = vmatpush.msra.mxu0 %v106
    %295 = vmatpush.msra.mxu0 %v102
    %296 = vmatpush.msra.mxu0 %v98
    %297 = vmatmul.f32.gmra.mxu0 %v237
    %v298 = vpop.f32.mrf.mxu0
    %v299 = vadd.f32 %v228, %v298
    %300 = vdwg.mxu0
    %301 = vmatpush.msra.mxu0 %v222
    %302 = vmatpush.msra.mxu0 %v218
    %303 = vmatpush.msra.mxu0 %v214
    %304 = vmatpush.msra.mxu0 %v210
    %305 = vmatpush.msra.mxu0 %v206
    %306 = vmatpush.msra.mxu0 %v202
    %307 = vmatpush.msra.mxu0 %v198
    %308 = vmatpush.msra.mxu0 %v194
    %309 = vmatpush.msra.mxu0 %v190
    %310 = vmatpush.msra.mxu0 %v186
    %311 = vmatpush.msra.mxu0 %v182
    %312 = vmatpush.msra.mxu0 %v178
    %313 = vmatpush.msra.mxu0 %v174
    %314 = vmatpush.msra.mxu0 %v170
    %315 = vmatpush.msra.mxu0 %v166
    %316 = vmatpush.msra.mxu0 %v162
    %317 = vmatmul.f32.gmra.mxu0 %v238
    %v318 = vpop.f32.mrf.mxu0
    %v319 = vadd.f32 %v299, %v318
    %320 = vdwg.mxu0
    %321 = vmatpush.msra.mxu0 %v159
    %322 = vmatpush.msra.mxu0 %v155
    %323 = vmatpush.msra.mxu0 %v151
    %324 = vmatpush.msra.mxu0 %v147
    %325 = vmatpush.msra.mxu0 %v143
    %326 = vmatpush.msra.mxu0 %v139
    %327 = vmatpush.msra.mxu0 %v135
    %328 = vmatpush.msra.mxu0 %v131
    %329 = vmatpush.msra.mxu0 %v127
    %330 = vmatpush.msra.mxu0 %v123
    %331 = vmatpush.msra.mxu0 %v119
    %332 = vmatpush.msra.mxu0 %v115
    %333 = vmatpush.msra.mxu0 %v111
    %334 = vmatpush.msra.mxu0 %v107
    %335 = vmatpush.msra.mxu0 %v103
    %336 = vmatpush.msra.mxu0 %v99
    %337 = vmatmul.f32.gmra.mxu0 %v237
    %v338 = vpop.f32.mrf.mxu0
    %v339 = vadd.f32 %v229, %v338
    %340 = vdwg.mxu0
    %341 = vmatpush.msra.mxu0 %v223
    %342 = vmatpush.msra.mxu0 %v219
    %343 = vmatpush.msra.mxu0 %v215
    %344 = vmatpush.msra.mxu0 %v211
    %345 = vmatpush.msra.mxu0 %v207
    %346 = vmatpush.msra.mxu0 %v203
    %347 = vmatpush.msra.mxu0 %v199
    %348 = vmatpush.msra.mxu0 %v195
    %349 = vmatpush.msra.mxu0 %v191
    %350 = vmatpush.msra.mxu0 %v187
    %351 = vmatpush.msra.mxu0 %v183
    %352 = vmatpush.msra.mxu0 %v179
    %353 = vmatpush.msra.mxu0 %v175
    %354 = vmatpush.msra.mxu0 %v171
    %355 = vmatpush.msra.mxu0 %v167
    %356 = vmatpush.msra.mxu0 %v163
    %357 = vmatmul.f32.gmra.mxu0 %v238
    %v358 = vpop.f32.mrf.mxu0
    %v359 = vadd.f32 %v339, %v358
    %360 = vdwg.mxu0
    %361 = vmatpush.msra.mxu0 %v160
    %362 = vmatpush.msra.mxu0 %v156
    %363 = vmatpush.msra.mxu0 %v152
    %364 = vmatpush.msra.mxu0 %v148
    %365 = vmatpush.msra.mxu0 %v144
    %366 = vmatpush.msra.mxu0 %v140
    %367 = vmatpush.msra.mxu0 %v136
    %368 = vmatpush.msra.mxu0 %v132
    %369 = vmatpush.msra.mxu0 %v128
    %370 = vmatpush.msra.mxu0 %v124
    %371 = vmatpush.msra.mxu0 %v120
    %372 = vmatpush.msra.mxu0 %v116
    %373 = vmatpush.msra.mxu0 %v112
    %374 = vmatpush.msra.mxu0 %v108
    %375 = vmatpush.msra.mxu0 %v104
    %376 = vmatpush.msra.mxu0 %v100
    %377 = vmatmul.f32.gmra.mxu0 %v237
    %v378 = vpop.f32.mrf.mxu0
    %v379 = vadd.f32 %v230, %v378
    %380 = vdwg.mxu0
    %381 = vmatpush.msra.mxu0 %v224
    %382 = vmatpush.msra.mxu0 %v220
    %383 = vmatpush.msra.mxu0 %v216
    %384 = vmatpush.msra.mxu0 %v212
    %385 = vmatpush.msra.mxu0 %v208
    %386 = vmatpush.msra.mxu0 %v204
    %387 = vmatpush.msra.mxu0 %v200
    %388 = vmatpush.msra.mxu0 %v196
    %389 = vmatpush.msra.mxu0 %v192
    %390 = vmatpush.msra.mxu0 %v188
    %391 = vmatpush.msra.mxu0 %v184
    %392 = vmatpush.msra.mxu0 %v180
    %393 = vmatpush.msra.mxu0 %v176
    %394 = vmatpush.msra.mxu0 %v172
    %395 = vmatpush.msra.mxu0 %v168
    %396 = vmatpush.msra.mxu0 %v164
    %397 = vmatmul.f32.gmra.mxu0 %v238
    %v398 = vpop.f32.mrf.mxu0
    %v399 = vadd.f32 %v379, %v398
    %400 = vdwg.mxu0
    %v401 = vmax.f32 %v279, 0.0
    %v402 = vmax.f32 %v319, 0.0
    %v403 = vmax.f32 %v359, 0.0
    %v404 = vmax.f32 %v399, 0.0
    %v405 = vld [vmem:[#allocation5] sm:$0xff]
    %v406 = vld [vmem:[#allocation5 + $0x8] sm:$0xff]
    %v407 = vld [vmem:[#allocation5 + $0x10] sm:$0xff]
    %v408 = vld [vmem:[#allocation5 + $0x18] sm:$0xff]
    %v409 = vld [vmem:[#allocation5 + $0x20] sm:$0xff]
    %v410 = vld [vmem:[#allocation5 + $0x28] sm:$0xff]
    %v411 = vld [vmem:[#allocation5 + $0x30] sm:$0xff]
    %v412 = vld [vmem:[#allocation5 + $0x38] sm:$0xff]
    %v413 = vld [vmem:[#allocation5 + $0x40] sm:$0xff]
    %v414 = vld [vmem:[#allocation5 + $0x48] sm:$0xff]
    %v415 = vld [vmem:[#allocation5 + $0x50] sm:$0xff]
    %v416 = vld [vmem:[#allocation5 + $0x58] sm:$0xff]
    %v417 = vld [vmem:[#allocation5 + $0x60] sm:$0xff]
    %v418 = vld [vmem:[#allocation5 + $0x68] sm:$0xff]
    %v419 = vld [vmem:[#allocation5 + $0x70] sm:$0xff]
    %v420 = vld [vmem:[#allocation5 + $0x78] sm:$0xff]
    %v421 = vld [vmem:[#allocation5 + $0x80] sm:$0xff]
    %v422 = vld [vmem:[#allocation5 + $0x88] sm:$0xff]
    %v423 = vld [vmem:[#allocation5 + $0x90] sm:$0xff]
    %v424 = vld [vmem:[#allocation5 + $0x98] sm:$0xff]
    %v425 = vld [vmem:[#allocation5 + $0xa0] sm:$0xff]
    %v426 = vld [vmem:[#allocation5 + $0xa8] sm:$0xff]
    %v427 = vld [vmem:[#allocation5 + $0xb0] sm:$0xff]
    %v428 = vld [vmem:[#allocation5 + $0xb8] sm:$0xff]
    %v429 = vld [vmem:[#allocation5 + $0xc0] sm:$0xff]
    %v430 = vld [vmem:[#allocation5 + $0xc8] sm:$0xff]
    %v431 = vld [vmem:[#allocation5 + $0xd0] sm:$0xff]
    %v432 = vld [vmem:[#allocation5 + $0xd8] sm:$0xff]
    %v433 = vld [vmem:[#allocation5 + $0xe0] sm:$0xff]
    %v434 = vld [vmem:[#allocation5 + $0xe8] sm:$0xff]
    %v435 = vld [vmem:[#allocation5 + $0xf0] sm:$0xff]
    %v436 = vld [vmem:[#allocation5 + $0xf8] sm:$0xff]
    %v437 = vld [vmem:[#allocation5 + $0x100] sm:$0xff]
    %v438 = vld [vmem:[#allocation5 + $0x108] sm:$0xff]
    %v439 = vld [vmem:[#allocation5 + $0x110] sm:$0xff]
    %v440 = vld [vmem:[#allocation5 + $0x118] sm:$0xff]
    %v441 = vld [vmem:[#allocation5 + $0x120] sm:$0xff]
    %v442 = vld [vmem:[#allocation5 + $0x128] sm:$0xff]
    %v443 = vld [vmem:[#allocation5 + $0x130] sm:$0xff]
    %v444 = vld [vmem:[#allocation5 + $0x138] sm:$0xff]
    %v445 = vld [vmem:[#allocation5 + $0x140] sm:$0xff]
    %v446 = vld [vmem:[#allocation5 + $0x148] sm:$0xff]
    %v447 = vld [vmem:[#allocation5 + $0x150] sm:$0xff]
    %v448 = vld [vmem:[#allocation5 + $0x158] sm:$0xff]
    %v449 = vld [vmem:[#allocation5 + $0x160] sm:$0xff]
    %v450 = vld [vmem:[#allocation5 + $0x168] sm:$0xff]
    %v451 = vld [vmem:[#allocation5 + $0x170] sm:$0xff]
    %v452 = vld [vmem:[#allocation5 + $0x178] sm:$0xff]
    %v453 = vld [vmem:[#allocation5 + $0x180] sm:$0xff]
    %v454 = vld [vmem:[#allocation5 + $0x188] sm:$0xff]
    %v455 = vld [vmem:[#allocation5 + $0x190] sm:$0xff]
    %v456 = vld [vmem:[#allocation5 + $0x198] sm:$0xff]
    %v457 = vld [vmem:[#allocation5 + $0x1a0] sm:$0xff]
    %v458 = vld [vmem:[#allocation5 + $0x1a8] sm:$0xff]
    %v459 = vld [vmem:[#allocation5 + $0x1b0] sm:$0xff]
    %v460 = vld [vmem:[#allocation5 + $0x1b8] sm:$0xff]
    %v461 = vld [vmem:[#allocation5 + $0x1c0] sm:$0xff]
    %v462 = vld [vmem:[#allocation5 + $0x1c8] sm:$0xff]
    %v463 = vld [vmem:[#allocation5 + $0x1d0] sm:$0xff]
    %v464 = vld [vmem:[#allocation5 + $0x1d8] sm:$0xff]
    %v465 = vld [vmem:[#allocation5 + $0x1e0] sm:$0xff]
    %v466 = vld [vmem:[#allocation5 + $0x1e8] sm:$0xff]
    %v467 = vld [vmem:[#allocation5 + $0x1f0] sm:$0xff]
    %v468 = vld [vmem:[#allocation5 + $0x1f8] sm:$0xff]
    %v469 = vld [vmem:[#allocation5 + $0x200] sm:$0xff]
    %v470 = vld [vmem:[#allocation5 + $0x208] sm:$0xff]
    %v471 = vld [vmem:[#allocation5 + $0x210] sm:$0xff]
    %v472 = vld [vmem:[#allocation5 + $0x218] sm:$0xff]
    %v473 = vld [vmem:[#allocation5 + $0x220] sm:$0xff]
    %v474 = vld [vmem:[#allocation5 + $0x228] sm:$0xff]
    %v475 = vld [vmem:[#allocation5 + $0x230] sm:$0xff]
    %v476 = vld [vmem:[#allocation5 + $0x238] sm:$0xff]
    %v477 = vld [vmem:[#allocation5 + $0x240] sm:$0xff]
    %v478 = vld [vmem:[#allocation5 + $0x248] sm:$0xff]
    %v479 = vld [vmem:[#allocation5 + $0x250] sm:$0xff]
    %v480 = vld [vmem:[#allocation5 + $0x258] sm:$0xff]
    %v481 = vld [vmem:[#allocation5 + $0x260] sm:$0xff]
    %v482 = vld [vmem:[#allocation5 + $0x268] sm:$0xff]
    %v483 = vld [vmem:[#allocation5 + $0x270] sm:$0xff]
    %v484 = vld [vmem:[#allocation5 + $0x278] sm:$0xff]
    %v485 = vld [vmem:[#allocation5 + $0x280] sm:$0xff]
    %v486 = vld [vmem:[#allocation5 + $0x288] sm:$0xff]
    %v487 = vld [vmem:[#allocation5 + $0x290] sm:$0xff]
    %v488 = vld [vmem:[#allocation5 + $0x298] sm:$0xff]
    %v489 = vld [vmem:[#allocation5 + $0x2a0] sm:$0xff]
    %v490 = vld [vmem:[#allocation5 + $0x2a8] sm:$0xff]
    %v491 = vld [vmem:[#allocation5 + $0x2b0] sm:$0xff]
    %v492 = vld [vmem:[#allocation5 + $0x2b8] sm:$0xff]
    %v493 = vld [vmem:[#allocation5 + $0x2c0] sm:$0xff]
    %v494 = vld [vmem:[#allocation5 + $0x2c8] sm:$0xff]
    %v495 = vld [vmem:[#allocation5 + $0x2d0] sm:$0xff]
    %v496 = vld [vmem:[#allocation5 + $0x2d8] sm:$0xff]
    %v497 = vld [vmem:[#allocation5 + $0x2e0] sm:$0xff]
    %v498 = vld [vmem:[#allocation5 + $0x2e8] sm:$0xff]
    %v499 = vld [vmem:[#allocation5 + $0x2f0] sm:$0xff]
    %v500 = vld [vmem:[#allocation5 + $0x2f8] sm:$0xff]
    %v501 = vld [vmem:[#allocation5 + $0x300] sm:$0xff]
    %v502 = vld [vmem:[#allocation5 + $0x308] sm:$0xff]
    %v503 = vld [vmem:[#allocation5 + $0x310] sm:$0xff]
    %v504 = vld [vmem:[#allocation5 + $0x318] sm:$0xff]
    %v505 = vld [vmem:[#allocation5 + $0x320] sm:$0xff]
    %v506 = vld [vmem:[#allocation5 + $0x328] sm:$0xff]
    %v507 = vld [vmem:[#allocation5 + $0x330] sm:$0xff]
    %v508 = vld [vmem:[#allocation5 + $0x338] sm:$0xff]
    %v509 = vld [vmem:[#allocation5 + $0x340] sm:$0xff]
    %v510 = vld [vmem:[#allocation5 + $0x348] sm:$0xff]
    %v511 = vld [vmem:[#allocation5 + $0x350] sm:$0xff]
    %v512 = vld [vmem:[#allocation5 + $0x358] sm:$0xff]
    %v513 = vld [vmem:[#allocation5 + $0x360] sm:$0xff]
    %v514 = vld [vmem:[#allocation5 + $0x368] sm:$0xff]
    %v515 = vld [vmem:[#allocation5 + $0x370] sm:$0xff]
    %v516 = vld [vmem:[#allocation5 + $0x378] sm:$0xff]
    %v517 = vld [vmem:[#allocation5 + $0x380] sm:$0xff]
    %v518 = vld [vmem:[#allocation5 + $0x388] sm:$0xff]
    %v519 = vld [vmem:[#allocation5 + $0x390] sm:$0xff]
    %v520 = vld [vmem:[#allocation5 + $0x398] sm:$0xff]
    %v521 = vld [vmem:[#allocation5 + $0x3a0] sm:$0xff]
    %v522 = vld [vmem:[#allocation5 + $0x3a8] sm:$0xff]
    %v523 = vld [vmem:[#allocation5 + $0x3b0] sm:$0xff]
    %v524 = vld [vmem:[#allocation5 + $0x3b8] sm:$0xff]
    %v525 = vld [vmem:[#allocation5 + $0x3c0] sm:$0xff]
    %v526 = vld [vmem:[#allocation5 + $0x3c8] sm:$0xff]
    %v527 = vld [vmem:[#allocation5 + $0x3d0] sm:$0xff]
    %v528 = vld [vmem:[#allocation5 + $0x3d8] sm:$0xff]
    %v529 = vld [vmem:[#allocation5 + $0x3e0] sm:$0xff]
    %v530 = vld [vmem:[#allocation5 + $0x3e8] sm:$0xff]
    %v531 = vld [vmem:[#allocation5 + $0x3f0] sm:$0xff]
    %v532 = vld [vmem:[#allocation5 + $0x3f8] sm:$0xff]
    %v533 = vld [vmem:[#allocation5 + $0x400] sm:$0xff]
    %v534 = vld [vmem:[#allocation5 + $0x408] sm:$0xff]
    %v535 = vld [vmem:[#allocation5 + $0x410] sm:$0xff]
    %v536 = vld [vmem:[#allocation5 + $0x418] sm:$0xff]
    %v537 = vld [vmem:[#allocation5 + $0x420] sm:$0xff]
    %v538 = vld [vmem:[#allocation5 + $0x428] sm:$0xff]
    %v539 = vld [vmem:[#allocation5 + $0x430] sm:$0xff]
    %v540 = vld [vmem:[#allocation5 + $0x438] sm:$0xff]
    %v541 = vld [vmem:[#allocation5 + $0x440] sm:$0xff]
    %v542 = vld [vmem:[#allocation5 + $0x448] sm:$0xff]
    %v543 = vld [vmem:[#allocation5 + $0x450] sm:$0xff]
    %v544 = vld [vmem:[#allocation5 + $0x458] sm:$0xff]
    %v545 = vld [vmem:[#allocation5 + $0x460] sm:$0xff]
    %v546 = vld [vmem:[#allocation5 + $0x468] sm:$0xff]
    %v547 = vld [vmem:[#allocation5 + $0x470] sm:$0xff]
    %v548 = vld [vmem:[#allocation5 + $0x478] sm:$0xff]
    %v549 = vld [vmem:[#allocation5 + $0x480] sm:$0xff]
    %v550 = vld [vmem:[#allocation5 + $0x488] sm:$0xff]
    %v551 = vld [vmem:[#allocation5 + $0x490] sm:$0xff]
    %v552 = vld [vmem:[#allocation5 + $0x498] sm:$0xff]
    %v553 = vld [vmem:[#allocation5 + $0x4a0] sm:$0xff]
    %v554 = vld [vmem:[#allocation5 + $0x4a8] sm:$0xff]
    %v555 = vld [vmem:[#allocation5 + $0x4b0] sm:$0xff]
    %v556 = vld [vmem:[#allocation5 + $0x4b8] sm:$0xff]
    %v557 = vld [vmem:[#allocation5 + $0x4c0] sm:$0xff]
    %v558 = vld [vmem:[#allocation5 + $0x4c8] sm:$0xff]
    %v559 = vld [vmem:[#allocation5 + $0x4d0] sm:$0xff]
    %v560 = vld [vmem:[#allocation5 + $0x4d8] sm:$0xff]
    %v561 = vld [vmem:[#allocation5 + $0x4e0] sm:$0xff]
    %v562 = vld [vmem:[#allocation5 + $0x4e8] sm:$0xff]
    %v563 = vld [vmem:[#allocation5 + $0x4f0] sm:$0xff]
    %v564 = vld [vmem:[#allocation5 + $0x4f8] sm:$0xff]
    %v565 = vld [vmem:[#allocation5 + $0x500] sm:$0xff]
    %v566 = vld [vmem:[#allocation5 + $0x508] sm:$0xff]
    %v567 = vld [vmem:[#allocation5 + $0x510] sm:$0xff]
    %v568 = vld [vmem:[#allocation5 + $0x518] sm:$0xff]
    %v569 = vld [vmem:[#allocation5 + $0x520] sm:$0xff]
    %v570 = vld [vmem:[#allocation5 + $0x528] sm:$0xff]
    %v571 = vld [vmem:[#allocation5 + $0x530] sm:$0xff]
    %v572 = vld [vmem:[#allocation5 + $0x538] sm:$0xff]
    %v573 = vld [vmem:[#allocation5 + $0x540] sm:$0xff]
    %v574 = vld [vmem:[#allocation5 + $0x548] sm:$0xff]
    %v575 = vld [vmem:[#allocation5 + $0x550] sm:$0xff]
    %v576 = vld [vmem:[#allocation5 + $0x558] sm:$0xff]
    %v577 = vld [vmem:[#allocation5 + $0x560] sm:$0xff]
    %v578 = vld [vmem:[#allocation5 + $0x568] sm:$0xff]
    %v579 = vld [vmem:[#allocation5 + $0x570] sm:$0xff]
    %v580 = vld [vmem:[#allocation5 + $0x578] sm:$0xff]
    %v581 = vld [vmem:[#allocation5 + $0x580] sm:$0xff]
    %v582 = vld [vmem:[#allocation5 + $0x588] sm:$0xff]
    %v583 = vld [vmem:[#allocation5 + $0x590] sm:$0xff]
    %v584 = vld [vmem:[#allocation5 + $0x598] sm:$0xff]
    %v585 = vld [vmem:[#allocation5 + $0x5a0] sm:$0xff]
    %v586 = vld [vmem:[#allocation5 + $0x5a8] sm:$0xff]
    %v587 = vld [vmem:[#allocation5 + $0x5b0] sm:$0xff]
    %v588 = vld [vmem:[#allocation5 + $0x5b8] sm:$0xff]
    %v589 = vld [vmem:[#allocation5 + $0x5c0] sm:$0xff]
    %v590 = vld [vmem:[#allocation5 + $0x5c8] sm:$0xff]
    %v591 = vld [vmem:[#allocation5 + $0x5d0] sm:$0xff]
    %v592 = vld [vmem:[#allocation5 + $0x5d8] sm:$0xff]
    %v593 = vld [vmem:[#allocation5 + $0x5e0] sm:$0xff]
    %v594 = vld [vmem:[#allocation5 + $0x5e8] sm:$0xff]
    %v595 = vld [vmem:[#allocation5 + $0x5f0] sm:$0xff]
    %v596 = vld [vmem:[#allocation5 + $0x5f8] sm:$0xff]
    %v597 = vld [vmem:[#allocation5 + $0x600] sm:$0xff]
    %v598 = vld [vmem:[#allocation5 + $0x608] sm:$0xff]
    %v599 = vld [vmem:[#allocation5 + $0x610] sm:$0xff]
    %v600 = vld [vmem:[#allocation5 + $0x618] sm:$0xff]
    %v601 = vld [vmem:[#allocation5 + $0x620] sm:$0xff]
    %v602 = vld [vmem:[#allocation5 + $0x628] sm:$0xff]
    %v603 = vld [vmem:[#allocation5 + $0x630] sm:$0xff]
    %v604 = vld [vmem:[#allocation5 + $0x638] sm:$0xff]
    %v605 = vld [vmem:[#allocation5 + $0x640] sm:$0xff]
    %v606 = vld [vmem:[#allocation5 + $0x648] sm:$0xff]
    %v607 = vld [vmem:[#allocation5 + $0x650] sm:$0xff]
    %v608 = vld [vmem:[#allocation5 + $0x658] sm:$0xff]
    %v609 = vld [vmem:[#allocation5 + $0x660] sm:$0xff]
    %v610 = vld [vmem:[#allocation5 + $0x668] sm:$0xff]
    %v611 = vld [vmem:[#allocation5 + $0x670] sm:$0xff]
    %v612 = vld [vmem:[#allocation5 + $0x678] sm:$0xff]
    %v613 = vld [vmem:[#allocation5 + $0x680] sm:$0xff]
    %v614 = vld [vmem:[#allocation5 + $0x688] sm:$0xff]
    %v615 = vld [vmem:[#allocation5 + $0x690] sm:$0xff]
    %v616 = vld [vmem:[#allocation5 + $0x698] sm:$0xff]
    %v617 = vld [vmem:[#allocation5 + $0x6a0] sm:$0xff]
    %v618 = vld [vmem:[#allocation5 + $0x6a8] sm:$0xff]
    %v619 = vld [vmem:[#allocation5 + $0x6b0] sm:$0xff]
    %v620 = vld [vmem:[#allocation5 + $0x6b8] sm:$0xff]
    %v621 = vld [vmem:[#allocation5 + $0x6c0] sm:$0xff]
    %v622 = vld [vmem:[#allocation5 + $0x6c8] sm:$0xff]
    %v623 = vld [vmem:[#allocation5 + $0x6d0] sm:$0xff]
    %v624 = vld [vmem:[#allocation5 + $0x6d8] sm:$0xff]
    %v625 = vld [vmem:[#allocation5 + $0x6e0] sm:$0xff]
    %v626 = vld [vmem:[#allocation5 + $0x6e8] sm:$0xff]
    %v627 = vld [vmem:[#allocation5 + $0x6f0] sm:$0xff]
    %v628 = vld [vmem:[#allocation5 + $0x6f8] sm:$0xff]
    %v629 = vld [vmem:[#allocation5 + $0x700] sm:$0xff]
    %v630 = vld [vmem:[#allocation5 + $0x708] sm:$0xff]
    %v631 = vld [vmem:[#allocation5 + $0x710] sm:$0xff]
    %v632 = vld [vmem:[#allocation5 + $0x718] sm:$0xff]
    %v633 = vld [vmem:[#allocation5 + $0x720] sm:$0xff]
    %v634 = vld [vmem:[#allocation5 + $0x728] sm:$0xff]
    %v635 = vld [vmem:[#allocation5 + $0x730] sm:$0xff]
    %v636 = vld [vmem:[#allocation5 + $0x738] sm:$0xff]
    %v637 = vld [vmem:[#allocation5 + $0x740] sm:$0xff]
    %v638 = vld [vmem:[#allocation5 + $0x748] sm:$0xff]
    %v639 = vld [vmem:[#allocation5 + $0x750] sm:$0xff]
    %v640 = vld [vmem:[#allocation5 + $0x758] sm:$0xff]
    %v641 = vld [vmem:[#allocation5 + $0x760] sm:$0xff]
    %v642 = vld [vmem:[#allocation5 + $0x768] sm:$0xff]
    %v643 = vld [vmem:[#allocation5 + $0x770] sm:$0xff]
    %v644 = vld [vmem:[#allocation5 + $0x778] sm:$0xff]
    %v645 = vld [vmem:[#allocation5 + $0x780] sm:$0xff]
    %v646 = vld [vmem:[#allocation5 + $0x788] sm:$0xff]
    %v647 = vld [vmem:[#allocation5 + $0x790] sm:$0xff]
    %v648 = vld [vmem:[#allocation5 + $0x798] sm:$0xff]
    %v649 = vld [vmem:[#allocation5 + $0x7a0] sm:$0xff]
    %v650 = vld [vmem:[#allocation5 + $0x7a8] sm:$0xff]
    %v651 = vld [vmem:[#allocation5 + $0x7b0] sm:$0xff]
    %v652 = vld [vmem:[#allocation5 + $0x7b8] sm:$0xff]
    %v653 = vld [vmem:[#allocation5 + $0x7c0] sm:$0xff]
    %v654 = vld [vmem:[#allocation5 + $0x7c8] sm:$0xff]
    %v655 = vld [vmem:[#allocation5 + $0x7d0] sm:$0xff]
    %v656 = vld [vmem:[#allocation5 + $0x7d8] sm:$0xff]
    %v657 = vld [vmem:[#allocation5 + $0x7e0] sm:$0xff]
    %v658 = vld [vmem:[#allocation5 + $0x7e8] sm:$0xff]
    %v659 = vld [vmem:[#allocation5 + $0x7f0] sm:$0xff]
    %v660 = vld [vmem:[#allocation5 + $0x7f8] sm:$0xff]
    %v661 = vld [vmem:[#allocation5 + $0x800] sm:$0xff]
    %v662 = vld [vmem:[#allocation5 + $0x808] sm:$0xff]
    %v663 = vld [vmem:[#allocation5 + $0x810] sm:$0xff]
    %v664 = vld [vmem:[#allocation5 + $0x818] sm:$0xff]
    %v665 = vld [vmem:[#allocation5 + $0x820] sm:$0xff]
    %v666 = vld [vmem:[#allocation5 + $0x828] sm:$0xff]
    %v667 = vld [vmem:[#allocation5 + $0x830] sm:$0xff]
    %v668 = vld [vmem:[#allocation5 + $0x838] sm:$0xff]
    %v669 = vld [vmem:[#allocation5 + $0x840] sm:$0xff]
    %v670 = vld [vmem:[#allocation5 + $0x848] sm:$0xff]
    %v671 = vld [vmem:[#allocation5 + $0x850] sm:$0xff]
    %v672 = vld [vmem:[#allocation5 + $0x858] sm:$0xff]
    %v673 = vld [vmem:[#allocation5 + $0x860] sm:$0xff]
    %v674 = vld [vmem:[#allocation5 + $0x868] sm:$0xff]
    %v675 = vld [vmem:[#allocation5 + $0x870] sm:$0xff]
    %v676 = vld [vmem:[#allocation5 + $0x878] sm:$0xff]
    %v677 = vld [vmem:[#allocation5 + $0x880] sm:$0xff]
    %v678 = vld [vmem:[#allocation5 + $0x888] sm:$0xff]
    %v679 = vld [vmem:[#allocation5 + $0x890] sm:$0xff]
    %v680 = vld [vmem:[#allocation5 + $0x898] sm:$0xff]
    %v681 = vld [vmem:[#allocation5 + $0x8a0] sm:$0xff]
    %v682 = vld [vmem:[#allocation5 + $0x8a8] sm:$0xff]
    %v683 = vld [vmem:[#allocation5 + $0x8b0] sm:$0xff]
    %v684 = vld [vmem:[#allocation5 + $0x8b8] sm:$0xff]
    %v685 = vld [vmem:[#allocation5 + $0x8c0] sm:$0xff]
    %v686 = vld [vmem:[#allocation5 + $0x8c8] sm:$0xff]
    %v687 = vld [vmem:[#allocation5 + $0x8d0] sm:$0xff]
    %v688 = vld [vmem:[#allocation5 + $0x8d8] sm:$0xff]
    %v689 = vld [vmem:[#allocation5 + $0x8e0] sm:$0xff]
    %v690 = vld [vmem:[#allocation5 + $0x8e8] sm:$0xff]
    %v691 = vld [vmem:[#allocation5 + $0x8f0] sm:$0xff]
    %v692 = vld [vmem:[#allocation5 + $0x8f8] sm:$0xff]
    %v693 = vld [vmem:[#allocation5 + $0x900] sm:$0xff]
    %v694 = vld [vmem:[#allocation5 + $0x908] sm:$0xff]
    %v695 = vld [vmem:[#allocation5 + $0x910] sm:$0xff]
    %v696 = vld [vmem:[#allocation5 + $0x918] sm:$0xff]
    %v697 = vld [vmem:[#allocation5 + $0x920] sm:$0xff]
    %v698 = vld [vmem:[#allocation5 + $0x928] sm:$0xff]
    %v699 = vld [vmem:[#allocation5 + $0x930] sm:$0xff]
    %v700 = vld [vmem:[#allocation5 + $0x938] sm:$0xff]
    %v701 = vld [vmem:[#allocation5 + $0x940] sm:$0xff]
    %v702 = vld [vmem:[#allocation5 + $0x948] sm:$0xff]
    %v703 = vld [vmem:[#allocation5 + $0x950] sm:$0xff]
    %v704 = vld [vmem:[#allocation5 + $0x958] sm:$0xff]
    %v705 = vld [vmem:[#allocation5 + $0x960] sm:$0xff]
    %v706 = vld [vmem:[#allocation5 + $0x968] sm:$0xff]
    %v707 = vld [vmem:[#allocation5 + $0x970] sm:$0xff]
    %v708 = vld [vmem:[#allocation5 + $0x978] sm:$0xff]
    %v709 = vld [vmem:[#allocation5 + $0x980] sm:$0xff]
    %v710 = vld [vmem:[#allocation5 + $0x988] sm:$0xff]
    %v711 = vld [vmem:[#allocation5 + $0x990] sm:$0xff]
    %v712 = vld [vmem:[#allocation5 + $0x998] sm:$0xff]
    %v713 = vld [vmem:[#allocation5 + $0x9a0] sm:$0xff]
    %v714 = vld [vmem:[#allocation5 + $0x9a8] sm:$0xff]
    %v715 = vld [vmem:[#allocation5 + $0x9b0] sm:$0xff]
    %v716 = vld [vmem:[#allocation5 + $0x9b8] sm:$0xff]
    %v717 = vld [vmem:[#allocation5 + $0x9c0] sm:$0xff]
    %v718 = vld [vmem:[#allocation5 + $0x9c8] sm:$0xff]
    %v719 = vld [vmem:[#allocation5 + $0x9d0] sm:$0xff]
    %v720 = vld [vmem:[#allocation5 + $0x9d8] sm:$0xff]
    %v721 = vld [vmem:[#allocation5 + $0x9e0] sm:$0xff]
    %v722 = vld [vmem:[#allocation5 + $0x9e8] sm:$0xff]
    %v723 = vld [vmem:[#allocation5 + $0x9f0] sm:$0xff]
    %v724 = vld [vmem:[#allocation5 + $0x9f8] sm:$0xff]
    %v725 = vld [vmem:[#allocation5 + $0xa00] sm:$0xff]
    %v726 = vld [vmem:[#allocation5 + $0xa08] sm:$0xff]
    %v727 = vld [vmem:[#allocation5 + $0xa10] sm:$0xff]
    %v728 = vld [vmem:[#allocation5 + $0xa18] sm:$0xff]
    %v729 = vld [vmem:[#allocation5 + $0xa20] sm:$0xff]
    %v730 = vld [vmem:[#allocation5 + $0xa28] sm:$0xff]
    %v731 = vld [vmem:[#allocation5 + $0xa30] sm:$0xff]
    %v732 = vld [vmem:[#allocation5 + $0xa38] sm:$0xff]
    %v733 = vld [vmem:[#allocation5 + $0xa40] sm:$0xff]
    %v734 = vld [vmem:[#allocation5 + $0xa48] sm:$0xff]
    %v735 = vld [vmem:[#allocation5 + $0xa50] sm:$0xff]
    %v736 = vld [vmem:[#allocation5 + $0xa58] sm:$0xff]
    %v737 = vld [vmem:[#allocation5 + $0xa60] sm:$0xff]
    %v738 = vld [vmem:[#allocation5 + $0xa68] sm:$0xff]
    %v739 = vld [vmem:[#allocation5 + $0xa70] sm:$0xff]
    %v740 = vld [vmem:[#allocation5 + $0xa78] sm:$0xff]
    %v741 = vld [vmem:[#allocation5 + $0xa80] sm:$0xff]
    %v742 = vld [vmem:[#allocation5 + $0xa88] sm:$0xff]
    %v743 = vld [vmem:[#allocation5 + $0xa90] sm:$0xff]
    %v744 = vld [vmem:[#allocation5 + $0xa98] sm:$0xff]
    %v745 = vld [vmem:[#allocation5 + $0xaa0] sm:$0xff]
    %v746 = vld [vmem:[#allocation5 + $0xaa8] sm:$0xff]
    %v747 = vld [vmem:[#allocation5 + $0xab0] sm:$0xff]
    %v748 = vld [vmem:[#allocation5 + $0xab8] sm:$0xff]
    %v749 = vld [vmem:[#allocation5 + $0xac0] sm:$0xff]
    %v750 = vld [vmem:[#allocation5 + $0xac8] sm:$0xff]
    %v751 = vld [vmem:[#allocation5 + $0xad0] sm:$0xff]
    %v752 = vld [vmem:[#allocation5 + $0xad8] sm:$0xff]
    %v753 = vld [vmem:[#allocation5 + $0xae0] sm:$0xff]
    %v754 = vld [vmem:[#allocation5 + $0xae8] sm:$0xff]
    %v755 = vld [vmem:[#allocation5 + $0xaf0] sm:$0xff]
    %v756 = vld [vmem:[#allocation5 + $0xaf8] sm:$0xff]
    %v757 = vld [vmem:[#allocation5 + $0xb00] sm:$0xff]
    %v758 = vld [vmem:[#allocation5 + $0xb08] sm:$0xff]
    %v759 = vld [vmem:[#allocation5 + $0xb10] sm:$0xff]
    %v760 = vld [vmem:[#allocation5 + $0xb18] sm:$0xff]
    %v761 = vld [vmem:[#allocation5 + $0xb20] sm:$0xff]
    %v762 = vld [vmem:[#allocation5 + $0xb28] sm:$0xff]
    %v763 = vld [vmem:[#allocation5 + $0xb30] sm:$0xff]
    %v764 = vld [vmem:[#allocation5 + $0xb38] sm:$0xff]
    %v765 = vld [vmem:[#allocation5 + $0xb40] sm:$0xff]
    %v766 = vld [vmem:[#allocation5 + $0xb48] sm:$0xff]
    %v767 = vld [vmem:[#allocation5 + $0xb50] sm:$0xff]
    %v768 = vld [vmem:[#allocation5 + $0xb58] sm:$0xff]
    %v769 = vld [vmem:[#allocation5 + $0xb60] sm:$0xff]
    %v770 = vld [vmem:[#allocation5 + $0xb68] sm:$0xff]
    %v771 = vld [vmem:[#allocation5 + $0xb70] sm:$0xff]
    %v772 = vld [vmem:[#allocation5 + $0xb78] sm:$0xff]
    %v773 = vld [vmem:[#allocation5 + $0xb80] sm:$0xff]
    %v774 = vld [vmem:[#allocation5 + $0xb88] sm:$0xff]
    %v775 = vld [vmem:[#allocation5 + $0xb90] sm:$0xff]
    %v776 = vld [vmem:[#allocation5 + $0xb98] sm:$0xff]
    %v777 = vld [vmem:[#allocation5 + $0xba0] sm:$0xff]
    %v778 = vld [vmem:[#allocation5 + $0xba8] sm:$0xff]
    %v779 = vld [vmem:[#allocation5 + $0xbb0] sm:$0xff]
    %v780 = vld [vmem:[#allocation5 + $0xbb8] sm:$0xff]
    %v781 = vld [vmem:[#allocation5 + $0xbc0] sm:$0xff]
    %v782 = vld [vmem:[#allocation5 + $0xbc8] sm:$0xff]
    %v783 = vld [vmem:[#allocation5 + $0xbd0] sm:$0xff]
    %v784 = vld [vmem:[#allocation5 + $0xbd8] sm:$0xff]
    %v785 = vld [vmem:[#allocation5 + $0xbe0] sm:$0xff]
    %v786 = vld [vmem:[#allocation5 + $0xbe8] sm:$0xff]
    %v787 = vld [vmem:[#allocation5 + $0xbf0] sm:$0xff]
    %v788 = vld [vmem:[#allocation5 + $0xbf8] sm:$0xff]
    %v789 = vld [vmem:[#allocation5 + $0xc00] sm:$0xff]
    %v790 = vld [vmem:[#allocation5 + $0xc08] sm:$0xff]
    %v791 = vld [vmem:[#allocation5 + $0xc10] sm:$0xff]
    %v792 = vld [vmem:[#allocation5 + $0xc18] sm:$0xff]
    %v793 = vld [vmem:[#allocation5 + $0xc20] sm:$0xff]
    %v794 = vld [vmem:[#allocation5 + $0xc28] sm:$0xff]
    %v795 = vld [vmem:[#allocation5 + $0xc30] sm:$0xff]
    %v796 = vld [vmem:[#allocation5 + $0xc38] sm:$0xff]
    %v797 = vld [vmem:[#allocation5 + $0xc40] sm:$0xff]
    %v798 = vld [vmem:[#allocation5 + $0xc48] sm:$0xff]
    %v799 = vld [vmem:[#allocation5 + $0xc50] sm:$0xff]
    %v800 = vld [vmem:[#allocation5 + $0xc58] sm:$0xff]
    %v801 = vld [vmem:[#allocation5 + $0xc60] sm:$0xff]
    %v802 = vld [vmem:[#allocation5 + $0xc68] sm:$0xff]
    %v803 = vld [vmem:[#allocation5 + $0xc70] sm:$0xff]
    %v804 = vld [vmem:[#allocation5 + $0xc78] sm:$0xff]
    %v805 = vld [vmem:[#allocation5 + $0xc80] sm:$0xff]
    %v806 = vld [vmem:[#allocation5 + $0xc88] sm:$0xff]
    %v807 = vld [vmem:[#allocation5 + $0xc90] sm:$0xff]
    %v808 = vld [vmem:[#allocation5 + $0xc98] sm:$0xff]
    %v809 = vld [vmem:[#allocation5 + $0xca0] sm:$0xff]
    %v810 = vld [vmem:[#allocation5 + $0xca8] sm:$0xff]
    %v811 = vld [vmem:[#allocation5 + $0xcb0] sm:$0xff]
    %v812 = vld [vmem:[#allocation5 + $0xcb8] sm:$0xff]
    %v813 = vld [vmem:[#allocation5 + $0xcc0] sm:$0xff]
    %v814 = vld [vmem:[#allocation5 + $0xcc8] sm:$0xff]
    %v815 = vld [vmem:[#allocation5 + $0xcd0] sm:$0xff]
    %v816 = vld [vmem:[#allocation5 + $0xcd8] sm:$0xff]
    %v817 = vld [vmem:[#allocation5 + $0xce0] sm:$0xff]
    %v818 = vld [vmem:[#allocation5 + $0xce8] sm:$0xff]
    %v819 = vld [vmem:[#allocation5 + $0xcf0] sm:$0xff]
    %v820 = vld [vmem:[#allocation5 + $0xcf8] sm:$0xff]
    %v821 = vld [vmem:[#allocation5 + $0xd00] sm:$0xff]
    %v822 = vld [vmem:[#allocation5 + $0xd08] sm:$0xff]
    %v823 = vld [vmem:[#allocation5 + $0xd10] sm:$0xff]
    %v824 = vld [vmem:[#allocation5 + $0xd18] sm:$0xff]
    %v825 = vld [vmem:[#allocation5 + $0xd20] sm:$0xff]
    %v826 = vld [vmem:[#allocation5 + $0xd28] sm:$0xff]
    %v827 = vld [vmem:[#allocation5 + $0xd30] sm:$0xff]
    %v828 = vld [vmem:[#allocation5 + $0xd38] sm:$0xff]
    %v829 = vld [vmem:[#allocation5 + $0xd40] sm:$0xff]
    %v830 = vld [vmem:[#allocation5 + $0xd48] sm:$0xff]
    %v831 = vld [vmem:[#allocation5 + $0xd50] sm:$0xff]
    %v832 = vld [vmem:[#allocation5 + $0xd58] sm:$0xff]
    %v833 = vld [vmem:[#allocation5 + $0xd60] sm:$0xff]
    %v834 = vld [vmem:[#allocation5 + $0xd68] sm:$0xff]
    %v835 = vld [vmem:[#allocation5 + $0xd70] sm:$0xff]
    %v836 = vld [vmem:[#allocation5 + $0xd78] sm:$0xff]
    %v837 = vld [vmem:[#allocation5 + $0xd80] sm:$0xff]
    %v838 = vld [vmem:[#allocation5 + $0xd88] sm:$0xff]
    %v839 = vld [vmem:[#allocation5 + $0xd90] sm:$0xff]
    %v840 = vld [vmem:[#allocation5 + $0xd98] sm:$0xff]
    %v841 = vld [vmem:[#allocation5 + $0xda0] sm:$0xff]
    %v842 = vld [vmem:[#allocation5 + $0xda8] sm:$0xff]
    %v843 = vld [vmem:[#allocation5 + $0xdb0] sm:$0xff]
    %v844 = vld [vmem:[#allocation5 + $0xdb8] sm:$0xff]
    %v845 = vld [vmem:[#allocation5 + $0xdc0] sm:$0xff]
    %v846 = vld [vmem:[#allocation5 + $0xdc8] sm:$0xff]
    %v847 = vld [vmem:[#allocation5 + $0xdd0] sm:$0xff]
    %v848 = vld [vmem:[#allocation5 + $0xdd8] sm:$0xff]
    %v849 = vld [vmem:[#allocation5 + $0xde0] sm:$0xff]
    %v850 = vld [vmem:[#allocation5 + $0xde8] sm:$0xff]
    %v851 = vld [vmem:[#allocation5 + $0xdf0] sm:$0xff]
    %v852 = vld [vmem:[#allocation5 + $0xdf8] sm:$0xff]
    %v853 = vld [vmem:[#allocation5 + $0xe00] sm:$0xff]
    %v854 = vld [vmem:[#allocation5 + $0xe08] sm:$0xff]
    %v855 = vld [vmem:[#allocation5 + $0xe10] sm:$0xff]
    %v856 = vld [vmem:[#allocation5 + $0xe18] sm:$0xff]
    %v857 = vld [vmem:[#allocation5 + $0xe20] sm:$0xff]
    %v858 = vld [vmem:[#allocation5 + $0xe28] sm:$0xff]
    %v859 = vld [vmem:[#allocation5 + $0xe30] sm:$0xff]
    %v860 = vld [vmem:[#allocation5 + $0xe38] sm:$0xff]
    %v861 = vld [vmem:[#allocation5 + $0xe40] sm:$0xff]
    %v862 = vld [vmem:[#allocation5 + $0xe48] sm:$0xff]
    %v863 = vld [vmem:[#allocation5 + $0xe50] sm:$0xff]
    %v864 = vld [vmem:[#allocation5 + $0xe58] sm:$0xff]
    %v865 = vld [vmem:[#allocation5 + $0xe60] sm:$0xff]
    %v866 = vld [vmem:[#allocation5 + $0xe68] sm:$0xff]
    %v867 = vld [vmem:[#allocation5 + $0xe70] sm:$0xff]
    %v868 = vld [vmem:[#allocation5 + $0xe78] sm:$0xff]
    %v869 = vld [vmem:[#allocation5 + $0xe80] sm:$0xff]
    %v870 = vld [vmem:[#allocation5 + $0xe88] sm:$0xff]
    %v871 = vld [vmem:[#allocation5 + $0xe90] sm:$0xff]
    %v872 = vld [vmem:[#allocation5 + $0xe98] sm:$0xff]
    %v873 = vld [vmem:[#allocation5 + $0xea0] sm:$0xff]
    %v874 = vld [vmem:[#allocation5 + $0xea8] sm:$0xff]
    %v875 = vld [vmem:[#allocation5 + $0xeb0] sm:$0xff]
    %v876 = vld [vmem:[#allocation5 + $0xeb8] sm:$0xff]
    %v877 = vld [vmem:[#allocation5 + $0xec0] sm:$0xff]
    %v878 = vld [vmem:[#allocation5 + $0xec8] sm:$0xff]
    %v879 = vld [vmem:[#allocation5 + $0xed0] sm:$0xff]
    %v880 = vld [vmem:[#allocation5 + $0xed8] sm:$0xff]
    %v881 = vld [vmem:[#allocation5 + $0xee0] sm:$0xff]
    %v882 = vld [vmem:[#allocation5 + $0xee8] sm:$0xff]
    %v883 = vld [vmem:[#allocation5 + $0xef0] sm:$0xff]
    %v884 = vld [vmem:[#allocation5 + $0xef8] sm:$0xff]
    %v885 = vld [vmem:[#allocation5 + $0xf00] sm:$0xff]
    %v886 = vld [vmem:[#allocation5 + $0xf08] sm:$0xff]
    %v887 = vld [vmem:[#allocation5 + $0xf10] sm:$0xff]
    %v888 = vld [vmem:[#allocation5 + $0xf18] sm:$0xff]
    %v889 = vld [vmem:[#allocation5 + $0xf20] sm:$0xff]
    %v890 = vld [vmem:[#allocation5 + $0xf28] sm:$0xff]
    %v891 = vld [vmem:[#allocation5 + $0xf30] sm:$0xff]
    %v892 = vld [vmem:[#allocation5 + $0xf38] sm:$0xff]
    %v893 = vld [vmem:[#allocation5 + $0xf40] sm:$0xff]
    %v894 = vld [vmem:[#allocation5 + $0xf48] sm:$0xff]
    %v895 = vld [vmem:[#allocation5 + $0xf50] sm:$0xff]
    %v896 = vld [vmem:[#allocation5 + $0xf58] sm:$0xff]
    %v897 = vld [vmem:[#allocation5 + $0xf60] sm:$0xff]
    %v898 = vld [vmem:[#allocation5 + $0xf68] sm:$0xff]
    %v899 = vld [vmem:[#allocation5 + $0xf70] sm:$0xff]
    %v900 = vld [vmem:[#allocation5 + $0xf78] sm:$0xff]
    %v901 = vld [vmem:[#allocation5 + $0xf80] sm:$0xff]
    %v902 = vld [vmem:[#allocation5 + $0xf88] sm:$0xff]
    %v903 = vld [vmem:[#allocation5 + $0xf90] sm:$0xff]
    %v904 = vld [vmem:[#allocation5 + $0xf98] sm:$0xff]
    %v905 = vld [vmem:[#allocation5 + $0xfa0] sm:$0xff]
    %v906 = vld [vmem:[#allocation5 + $0xfa8] sm:$0xff]
    %v907 = vld [vmem:[#allocation5 + $0xfb0] sm:$0xff]
    %v908 = vld [vmem:[#allocation5 + $0xfb8] sm:$0xff]
    %v909 = vld [vmem:[#allocation5 + $0xfc0] sm:$0xff]
    %v910 = vld [vmem:[#allocation5 + $0xfc8] sm:$0xff]
    %v911 = vld [vmem:[#allocation5 + $0xfd0] sm:$0xff]
    %v912 = vld [vmem:[#allocation5 + $0xfd8] sm:$0xff]
    %v913 = vld [vmem:[#allocation5 + $0xfe0] sm:$0xff]
    %v914 = vld [vmem:[#allocation5 + $0xfe8] sm:$0xff]
    %v915 = vld [vmem:[#allocation5 + $0xff0] sm:$0xff]
    %v916 = vld [vmem:[#allocation5 + $0xff8] sm:$0xff]
    %v917 = vld [vmem:[%s4] sm:$0xff]
    %v919 = vperm.slane %v917, 0
    %v920 = vperm.slane %v917, 1
    %v921 = vperm.slane %v917, 2
    %v922 = vperm.slane %v917, 3
    %v923 = vperm.slane %v917, 4
    %v924 = vperm.slane %v917, 5
    %v925 = vperm.slane %v917, 6
    %v926 = vperm.slane %v917, 7
    %935 = vmatpush.msra.mxu0 %v525
    %936 = vmatpush.msra.mxu0 %v517
    %937 = vmatpush.msra.mxu0 %v509
    %938 = vmatpush.msra.mxu0 %v501
    %939 = vmatpush.msra.mxu0 %v493
    %940 = vmatpush.msra.mxu0 %v485
    %941 = vmatpush.msra.mxu0 %v477
    %942 = vmatpush.msra.mxu0 %v469
    %943 = vmatpush.msra.mxu0 %v461
    %944 = vmatpush.msra.mxu0 %v453
    %945 = vmatpush.msra.mxu0 %v445
    %946 = vmatpush.msra.mxu0 %v437
    %947 = vmatpush.msra.mxu0 %v429
    %948 = vmatpush.msra.mxu0 %v421
    %949 = vmatpush.msra.mxu0 %v413
    %950 = vmatpush.msra.mxu0 %v405
    %951 = vmatmul.f32.gmra.mxu0 %v401
    %v952 = vpop.f32.mrf.mxu0
    %v953 = vadd.f32 %v919, %v952
    %954 = vdwg.mxu0
    %955 = vmatpush.msra.mxu0 %v653
    %956 = vmatpush.msra.mxu0 %v645
    %957 = vmatpush.msra.mxu0 %v637
    %958 = vmatpush.msra.mxu0 %v629
    %959 = vmatpush.msra.mxu0 %v621
    %960 = vmatpush.msra.mxu0 %v613
    %961 = vmatpush.msra.mxu0 %v605
    %962 = vmatpush.msra.mxu0 %v597
    %963 = vmatpush.msra.mxu0 %v589
    %964 = vmatpush.msra.mxu0 %v581
    %965 = vmatpush.msra.mxu0 %v573
    %966 = vmatpush.msra.mxu0 %v565
    %967 = vmatpush.msra.mxu0 %v557
    %968 = vmatpush.msra.mxu0 %v549
    %969 = vmatpush.msra.mxu0 %v541
    %970 = vmatpush.msra.mxu0 %v533
    %971 = vmatmul.f32.gmra.mxu0 %v402
    %v972 = vpop.f32.mrf.mxu0
    %v973 = vadd.f32 %v953, %v972
    %974 = vdwg.mxu0
    %975 = vmatpush.msra.mxu0 %v781
    %976 = vmatpush.msra.mxu0 %v773
    %977 = vmatpush.msra.mxu0 %v765
    %978 = vmatpush.msra.mxu0 %v757
    %979 = vmatpush.msra.mxu0 %v749
    %980 = vmatpush.msra.mxu0 %v741
    %981 = vmatpush.msra.mxu0 %v733
    %982 = vmatpush.msra.mxu0 %v725
    %983 = vmatpush.msra.mxu0 %v717
    %984 = vmatpush.msra.mxu0 %v709
    %985 = vmatpush.msra.mxu0 %v701
    %986 = vmatpush.msra.mxu0 %v693
    %987 = vmatpush.msra.mxu0 %v685
    %988 = vmatpush.msra.mxu0 %v677
    %989 = vmatpush.msra.mxu0 %v669
    %990 = vmatpush.msra.mxu0 %v661
    %991 = vmatmul.f32.gmra.mxu0 %v403
    %v992 = vpop.f32.mrf.mxu0
    %v993 = vadd.f32 %v973, %v992
    %994 = vdwg.mxu0
    %995 = vmatpush.msra.mxu0 %v909
    %996 = vmatpush.msra.mxu0 %v901
    %997 = vmatpush.msra.mxu0 %v893
    %998 = vmatpush.msra.mxu0 %v885
    %999 = vmatpush.msra.mxu0 %v877
    %1000 = vmatpush.msra.mxu0 %v869
    %1001 = vmatpush.msra.mxu0 %v861
    %1002 = vmatpush.msra.mxu0 %v853
    %1003 = vmatpush.msra.mxu0 %v845
    %1004 = vmatpush.msra.mxu0 %v837
    %1005 = vmatpush.msra.mxu0 %v829
    %1006 = vmatpush.msra.mxu0 %v821
    %1007 = vmatpush.msra.mxu0 %v813
    %1008 = vmatpush.msra.mxu0 %v805
    %1009 = vmatpush.msra.mxu0 %v797
    %1010 = vmatpush.msra.mxu0 %v789
    %1011 = vmatmul.f32.gmra.mxu0 %v404
    %v1012 = vpop.f32.mrf.mxu0
    %v1013 = vadd.f32 %v993, %v1012
    %1014 = vdwg.mxu0
    %1015 = vmatpush.msra.mxu0 %v526
    %1016 = vmatpush.msra.mxu0 %v518
    %1017 = vmatpush.msra.mxu0 %v510
    %1018 = vmatpush.msra.mxu0 %v502
    %1019 = vmatpush.msra.mxu0 %v494
    %1020 = vmatpush.msra.mxu0 %v486
    %1021 = vmatpush.msra.mxu0 %v478
    %1022 = vmatpush.msra.mxu0 %v470
    %1023 = vmatpush.msra.mxu0 %v462
    %1024 = vmatpush.msra.mxu0 %v454
    %1025 = vmatpush.msra.mxu0 %v446
    %1026 = vmatpush.msra.mxu0 %v438
    %1027 = vmatpush.msra.mxu0 %v430
    %1028 = vmatpush.msra.mxu0 %v422
    %1029 = vmatpush.msra.mxu0 %v414
    %1030 = vmatpush.msra.mxu0 %v406
    %1031 = vmatmul.f32.gmra.mxu0 %v401
    %v1032 = vpop.f32.mrf.mxu0
    %v1033 = vadd.f32 %v920, %v1032
    %1034 = vdwg.mxu0
    %1035 = vmatpush.msra.mxu0 %v654
    %1036 = vmatpush.msra.mxu0 %v646
    %1037 = vmatpush.msra.mxu0 %v638
    %1038 = vmatpush.msra.mxu0 %v630
    %1039 = vmatpush.msra.mxu0 %v622
    %1040 = vmatpush.msra.mxu0 %v614
    %1041 = vmatpush.msra.mxu0 %v606
    %1042 = vmatpush.msra.mxu0 %v598
    %1043 = vmatpush.msra.mxu0 %v590
    %1044 = vmatpush.msra.mxu0 %v582
    %1045 = vmatpush.msra.mxu0 %v574
    %1046 = vmatpush.msra.mxu0 %v566
    %1047 = vmatpush.msra.mxu0 %v558
    %1048 = vmatpush.msra.mxu0 %v550
    %1049 = vmatpush.msra.mxu0 %v542
    %1050 = vmatpush.msra.mxu0 %v534
    %1051 = vmatmul.f32.gmra.mxu0 %v402
    %v1052 = vpop.f32.mrf.mxu0
    %v1053 = vadd.f32 %v1033, %v1052
    %1054 = vdwg.mxu0
    %1055 = vmatpush.msra.mxu0 %v782
    %1056 = vmatpush.msra.mxu0 %v774
    %1057 = vmatpush.msra.mxu0 %v766
    %1058 = vmatpush.msra.mxu0 %v758
    %1059 = vmatpush.msra.mxu0 %v750
    %1060 = vmatpush.msra.mxu0 %v742
    %1061 = vmatpush.msra.mxu0 %v734
    %1062 = vmatpush.msra.mxu0 %v726
    %1063 = vmatpush.msra.mxu0 %v718
    %1064 = vmatpush.msra.mxu0 %v710
    %1065 = vmatpush.msra.mxu0 %v702
    %1066 = vmatpush.msra.mxu0 %v694
    %1067 = vmatpush.msra.mxu0 %v686
    %1068 = vmatpush.msra.mxu0 %v678
    %1069 = vmatpush.msra.mxu0 %v670
    %1070 = vmatpush.msra.mxu0 %v662
    %1071 = vmatmul.f32.gmra.mxu0 %v403
    %v1072 = vpop.f32.mrf.mxu0
    %v1073 = vadd.f32 %v1053, %v1072
    %1074 = vdwg.mxu0
    %1075 = vmatpush.msra.mxu0 %v910
    %1076 = vmatpush.msra.mxu0 %v902
    %1077 = vmatpush.msra.mxu0 %v894
    %1078 = vmatpush.msra.mxu0 %v886
    %1079 = vmatpush.msra.mxu0 %v878
    %1080 = vmatpush.msra.mxu0 %v870
    %1081 = vmatpush.msra.mxu0 %v862
    %1082 = vmatpush.msra.mxu0 %v854
    %1083 = vmatpush.msra.mxu0 %v846
    %1084 = vmatpush.msra.mxu0 %v838
    %1085 = vmatpush.msra.mxu0 %v830
    %1086 = vmatpush.msra.mxu0 %v822
    %1087 = vmatpush.msra.mxu0 %v814
    %1088 = vmatpush.msra.mxu0 %v806
    %1089 = vmatpush.msra.mxu0 %v798
    %1090 = vmatpush.msra.mxu0 %v790
    %1091 = vmatmul.f32.gmra.mxu0 %v404
    %v1092 = vpop.f32.mrf.mxu0
    %v1093 = vadd.f32 %v1073, %v1092
    %1094 = vdwg.mxu0
    %1095 = vmatpush.msra.mxu0 %v527
    %1096 = vmatpush.msra.mxu0 %v519
    %1097 = vmatpush.msra.mxu0 %v511
    %1098 = vmatpush.msra.mxu0 %v503
    %1099 = vmatpush.msra.mxu0 %v495
    %1100 = vmatpush.msra.mxu0 %v487
    %1101 = vmatpush.msra.mxu0 %v479
    %1102 = vmatpush.msra.mxu0 %v471
    %1103 = vmatpush.msra.mxu0 %v463
    %1104 = vmatpush.msra.mxu0 %v455
    %1105 = vmatpush.msra.mxu0 %v447
    %1106 = vmatpush.msra.mxu0 %v439
    %1107 = vmatpush.msra.mxu0 %v431
    %1108 = vmatpush.msra.mxu0 %v423
    %1109 = vmatpush.msra.mxu0 %v415
    %1110 = vmatpush.msra.mxu0 %v407
    %1111 = vmatmul.f32.gmra.mxu0 %v401
    %v1112 = vpop.f32.mrf.mxu0
    %v1113 = vadd.f32 %v921, %v1112
    %1114 = vdwg.mxu0
    %1115 = vmatpush.msra.mxu0 %v655
    %1116 = vmatpush.msra.mxu0 %v647
    %1117 = vmatpush.msra.mxu0 %v639
    %1118 = vmatpush.msra.mxu0 %v631
    %1119 = vmatpush.msra.mxu0 %v623
    %1120 = vmatpush.msra.mxu0 %v615
    %1121 = vmatpush.msra.mxu0 %v607
    %1122 = vmatpush.msra.mxu0 %v599
    %1123 = vmatpush.msra.mxu0 %v591
    %1124 = vmatpush.msra.mxu0 %v583
    %1125 = vmatpush.msra.mxu0 %v575
    %1126 = vmatpush.msra.mxu0 %v567
    %1127 = vmatpush.msra.mxu0 %v559
    %1128 = vmatpush.msra.mxu0 %v551
    %1129 = vmatpush.msra.mxu0 %v543
    %1130 = vmatpush.msra.mxu0 %v535
    %1131 = vmatmul.f32.gmra.mxu0 %v402
    %v1132 = vpop.f32.mrf.mxu0
    %v1133 = vadd.f32 %v1113, %v1132
    %1134 = vdwg.mxu0
    %1135 = vmatpush.msra.mxu0 %v783
    %1136 = vmatpush.msra.mxu0 %v775
    %1137 = vmatpush.msra.mxu0 %v767
    %1138 = vmatpush.msra.mxu0 %v759
    %1139 = vmatpush.msra.mxu0 %v751
    %1140 = vmatpush.msra.mxu0 %v743
    %1141 = vmatpush.msra.mxu0 %v735
    %1142 = vmatpush.msra.mxu0 %v727
    %1143 = vmatpush.msra.mxu0 %v719
    %1144 = vmatpush.msra.mxu0 %v711
    %1145 = vmatpush.msra.mxu0 %v703
    %1146 = vmatpush.msra.mxu0 %v695
    %1147 = vmatpush.msra.mxu0 %v687
    %1148 = vmatpush.msra.mxu0 %v679
    %1149 = vmatpush.msra.mxu0 %v671
    %1150 = vmatpush.msra.mxu0 %v663
    %1151 = vmatmul.f32.gmra.mxu0 %v403
    %v1152 = vpop.f32.mrf.mxu0
    %v1153 = vadd.f32 %v1133, %v1152
    %1154 = vdwg.mxu0
    %1155 = vmatpush.msra.mxu0 %v911
    %1156 = vmatpush.msra.mxu0 %v903
    %1157 = vmatpush.msra.mxu0 %v895
    %1158 = vmatpush.msra.mxu0 %v887
    %1159 = vmatpush.msra.mxu0 %v879
    %1160 = vmatpush.msra.mxu0 %v871
    %1161 = vmatpush.msra.mxu0 %v863
    %1162 = vmatpush.msra.mxu0 %v855
    %1163 = vmatpush.msra.mxu0 %v847
    %1164 = vmatpush.msra.mxu0 %v839
    %1165 = vmatpush.msra.mxu0 %v831
    %1166 = vmatpush.msra.mxu0 %v823
    %1167 = vmatpush.msra.mxu0 %v815
    %1168 = vmatpush.msra.mxu0 %v807
    %1169 = vmatpush.msra.mxu0 %v799
    %1170 = vmatpush.msra.mxu0 %v791
    %1171 = vmatmul.f32.gmra.mxu0 %v404
    %v1172 = vpop.f32.mrf.mxu0
    %v1173 = vadd.f32 %v1153, %v1172
    %1174 = vdwg.mxu0
    %1175 = vmatpush.msra.mxu0 %v528
    %1176 = vmatpush.msra.mxu0 %v520
    %1177 = vmatpush.msra.mxu0 %v512
    %1178 = vmatpush.msra.mxu0 %v504
    %1179 = vmatpush.msra.mxu0 %v496
    %1180 = vmatpush.msra.mxu0 %v488
    %1181 = vmatpush.msra.mxu0 %v480
    %1182 = vmatpush.msra.mxu0 %v472
    %1183 = vmatpush.msra.mxu0 %v464
    %1184 = vmatpush.msra.mxu0 %v456
    %1185 = vmatpush.msra.mxu0 %v448
    %1186 = vmatpush.msra.mxu0 %v440
    %1187 = vmatpush.msra.mxu0 %v432
    %1188 = vmatpush.msra.mxu0 %v424
    %1189 = vmatpush.msra.mxu0 %v416
    %1190 = vmatpush.msra.mxu0 %v408
    %1191 = vmatmul.f32.gmra.mxu0 %v401
    %v1192 = vpop.f32.mrf.mxu0
    %v1193 = vadd.f32 %v922, %v1192
    %1194 = vdwg.mxu0
    %1195 = vmatpush.msra.mxu0 %v656
    %1196 = vmatpush.msra.mxu0 %v648
    %1197 = vmatpush.msra.mxu0 %v640
    %1198 = vmatpush.msra.mxu0 %v632
    %1199 = vmatpush.msra.mxu0 %v624
    %1200 = vmatpush.msra.mxu0 %v616
    %1201 = vmatpush.msra.mxu0 %v608
    %1202 = vmatpush.msra.mxu0 %v600
    %1203 = vmatpush.msra.mxu0 %v592
    %1204 = vmatpush.msra.mxu0 %v584
    %1205 = vmatpush.msra.mxu0 %v576
    %1206 = vmatpush.msra.mxu0 %v568
    %1207 = vmatpush.msra.mxu0 %v560
    %1208 = vmatpush.msra.mxu0 %v552
    %1209 = vmatpush.msra.mxu0 %v544
    %1210 = vmatpush.msra.mxu0 %v536
    %1211 = vmatmul.f32.gmra.mxu0 %v402
    %v1212 = vpop.f32.mrf.mxu0
    %v1213 = vadd.f32 %v1193, %v1212
    %1214 = vdwg.mxu0
    %1215 = vmatpush.msra.mxu0 %v784
    %1216 = vmatpush.msra.mxu0 %v776
    %1217 = vmatpush.msra.mxu0 %v768
    %1218 = vmatpush.msra.mxu0 %v760
    %1219 = vmatpush.msra.mxu0 %v752
    %1220 = vmatpush.msra.mxu0 %v744
    %1221 = vmatpush.msra.mxu0 %v736
    %1222 = vmatpush.msra.mxu0 %v728
    %1223 = vmatpush.msra.mxu0 %v720
    %1224 = vmatpush.msra.mxu0 %v712
    %1225 = vmatpush.msra.mxu0 %v704
    %1226 = vmatpush.msra.mxu0 %v696
    %1227 = vmatpush.msra.mxu0 %v688
    %1228 = vmatpush.msra.mxu0 %v680
    %1229 = vmatpush.msra.mxu0 %v672
    %1230 = vmatpush.msra.mxu0 %v664
    %1231 = vmatmul.f32.gmra.mxu0 %v403
    %v1232 = vpop.f32.mrf.mxu0
    %v1233 = vadd.f32 %v1213, %v1232
    %1234 = vdwg.mxu0
    %1235 = vmatpush.msra.mxu0 %v912
    %1236 = vmatpush.msra.mxu0 %v904
    %1237 = vmatpush.msra.mxu0 %v896
    %1238 = vmatpush.msra.mxu0 %v888
    %1239 = vmatpush.msra.mxu0 %v880
    %1240 = vmatpush.msra.mxu0 %v872
    %1241 = vmatpush.msra.mxu0 %v864
    %1242 = vmatpush.msra.mxu0 %v856
    %1243 = vmatpush.msra.mxu0 %v848
    %1244 = vmatpush.msra.mxu0 %v840
    %1245 = vmatpush.msra.mxu0 %v832
    %1246 = vmatpush.msra.mxu0 %v824
    %1247 = vmatpush.msra.mxu0 %v816
    %1248 = vmatpush.msra.mxu0 %v808
    %1249 = vmatpush.msra.mxu0 %v800
    %1250 = vmatpush.msra.mxu0 %v792
    %1251 = vmatmul.f32.gmra.mxu0 %v404
    %v1252 = vpop.f32.mrf.mxu0
    %v1253 = vadd.f32 %v1233, %v1252
    %1254 = vdwg.mxu0
    %1255 = vmatpush.msra.mxu0 %v529
    %1256 = vmatpush.msra.mxu0 %v521
    %1257 = vmatpush.msra.mxu0 %v513
    %1258 = vmatpush.msra.mxu0 %v505
    %1259 = vmatpush.msra.mxu0 %v497
    %1260 = vmatpush.msra.mxu0 %v489
    %1261 = vmatpush.msra.mxu0 %v481
    %1262 = vmatpush.msra.mxu0 %v473
    %1263 = vmatpush.msra.mxu0 %v465
    %1264 = vmatpush.msra.mxu0 %v457
    %1265 = vmatpush.msra.mxu0 %v449
    %1266 = vmatpush.msra.mxu0 %v441
    %1267 = vmatpush.msra.mxu0 %v433
    %1268 = vmatpush.msra.mxu0 %v425
    %1269 = vmatpush.msra.mxu0 %v417
    %1270 = vmatpush.msra.mxu0 %v409
    %1271 = vmatmul.f32.gmra.mxu0 %v401
    %v1272 = vpop.f32.mrf.mxu0
    %v1273 = vadd.f32 %v923, %v1272
    %1274 = vdwg.mxu0
    %1275 = vmatpush.msra.mxu0 %v657
    %1276 = vmatpush.msra.mxu0 %v649
    %1277 = vmatpush.msra.mxu0 %v641
    %1278 = vmatpush.msra.mxu0 %v633
    %1279 = vmatpush.msra.mxu0 %v625
    %1280 = vmatpush.msra.mxu0 %v617
    %1281 = vmatpush.msra.mxu0 %v609
    %1282 = vmatpush.msra.mxu0 %v601
    %1283 = vmatpush.msra.mxu0 %v593
    %1284 = vmatpush.msra.mxu0 %v585
    %1285 = vmatpush.msra.mxu0 %v577
    %1286 = vmatpush.msra.mxu0 %v569
    %1287 = vmatpush.msra.mxu0 %v561
    %1288 = vmatpush.msra.mxu0 %v553
    %1289 = vmatpush.msra.mxu0 %v545
    %1290 = vmatpush.msra.mxu0 %v537
    %1291 = vmatmul.f32.gmra.mxu0 %v402
    %v1292 = vpop.f32.mrf.mxu0
    %v1293 = vadd.f32 %v1273, %v1292
    %1294 = vdwg.mxu0
    %1295 = vmatpush.msra.mxu0 %v785
    %1296 = vmatpush.msra.mxu0 %v777
    %1297 = vmatpush.msra.mxu0 %v769
    %1298 = vmatpush.msra.mxu0 %v761
    %1299 = vmatpush.msra.mxu0 %v753
    %1300 = vmatpush.msra.mxu0 %v745
    %1301 = vmatpush.msra.mxu0 %v737
    %1302 = vmatpush.msra.mxu0 %v729
    %1303 = vmatpush.msra.mxu0 %v721
    %1304 = vmatpush.msra.mxu0 %v713
    %1305 = vmatpush.msra.mxu0 %v705
    %1306 = vmatpush.msra.mxu0 %v697
    %1307 = vmatpush.msra.mxu0 %v689
    %1308 = vmatpush.msra.mxu0 %v681
    %1309 = vmatpush.msra.mxu0 %v673
    %1310 = vmatpush.msra.mxu0 %v665
    %1311 = vmatmul.f32.gmra.mxu0 %v403
    %v1312 = vpop.f32.mrf.mxu0
    %v1313 = vadd.f32 %v1293, %v1312
    %1314 = vdwg.mxu0
    %1315 = vmatpush.msra.mxu0 %v913
    %1316 = vmatpush.msra.mxu0 %v905
    %1317 = vmatpush.msra.mxu0 %v897
    %1318 = vmatpush.msra.mxu0 %v889
    %1319 = vmatpush.msra.mxu0 %v881
    %1320 = vmatpush.msra.mxu0 %v873
    %1321 = vmatpush.msra.mxu0 %v865
    %1322 = vmatpush.msra.mxu0 %v857
    %1323 = vmatpush.msra.mxu0 %v849
    %1324 = vmatpush.msra.mxu0 %v841
    %1325 = vmatpush.msra.mxu0 %v833
    %1326 = vmatpush.msra.mxu0 %v825
    %1327 = vmatpush.msra.mxu0 %v817
    %1328 = vmatpush.msra.mxu0 %v809
    %1329 = vmatpush.msra.mxu0 %v801
    %1330 = vmatpush.msra.mxu0 %v793
    %1331 = vmatmul.f32.gmra.mxu0 %v404
    %v1332 = vpop.f32.mrf.mxu0
    %v1333 = vadd.f32 %v1313, %v1332
    %1334 = vdwg.mxu0
    %1335 = vmatpush.msra.mxu0 %v530
    %1336 = vmatpush.msra.mxu0 %v522
    %1337 = vmatpush.msra.mxu0 %v514
    %1338 = vmatpush.msra.mxu0 %v506
    %1339 = vmatpush.msra.mxu0 %v498
    %1340 = vmatpush.msra.mxu0 %v490
    %1341 = vmatpush.msra.mxu0 %v482
    %1342 = vmatpush.msra.mxu0 %v474
    %1343 = vmatpush.msra.mxu0 %v466
    %1344 = vmatpush.msra.mxu0 %v458
    %1345 = vmatpush.msra.mxu0 %v450
    %1346 = vmatpush.msra.mxu0 %v442
    %1347 = vmatpush.msra.mxu0 %v434
    %1348 = vmatpush.msra.mxu0 %v426
    %1349 = vmatpush.msra.mxu0 %v418
    %1350 = vmatpush.msra.mxu0 %v410
    %1351 = vmatmul.f32.gmra.mxu0 %v401
    %v1352 = vpop.f32.mrf.mxu0
    %v1353 = vadd.f32 %v924, %v1352
    %1354 = vdwg.mxu0
    %1355 = vmatpush.msra.mxu0 %v658
    %1356 = vmatpush.msra.mxu0 %v650
    %1357 = vmatpush.msra.mxu0 %v642
    %1358 = vmatpush.msra.mxu0 %v634
    %1359 = vmatpush.msra.mxu0 %v626
    %1360 = vmatpush.msra.mxu0 %v618
    %1361 = vmatpush.msra.mxu0 %v610
    %1362 = vmatpush.msra.mxu0 %v602
    %1363 = vmatpush.msra.mxu0 %v594
    %1364 = vmatpush.msra.mxu0 %v586
    %1365 = vmatpush.msra.mxu0 %v578
    %1366 = vmatpush.msra.mxu0 %v570
    %1367 = vmatpush.msra.mxu0 %v562
    %1368 = vmatpush.msra.mxu0 %v554
    %1369 = vmatpush.msra.mxu0 %v546
    %1370 = vmatpush.msra.mxu0 %v538
    %1371 = vmatmul.f32.gmra.mxu0 %v402
    %v1372 = vpop.f32.mrf.mxu0
    %v1373 = vadd.f32 %v1353, %v1372
    %1374 = vdwg.mxu0
    %1375 = vmatpush.msra.mxu0 %v786
    %1376 = vmatpush.msra.mxu0 %v778
    %1377 = vmatpush.msra.mxu0 %v770
    %1378 = vmatpush.msra.mxu0 %v762
    %1379 = vmatpush.msra.mxu0 %v754
    %1380 = vmatpush.msra.mxu0 %v746
    %1381 = vmatpush.msra.mxu0 %v738
    %1382 = vmatpush.msra.mxu0 %v730
    %1383 = vmatpush.msra.mxu0 %v722
    %1384 = vmatpush.msra.mxu0 %v714
    %1385 = vmatpush.msra.mxu0 %v706
    %1386 = vmatpush.msra.mxu0 %v698
    %1387 = vmatpush.msra.mxu0 %v690
    %1388 = vmatpush.msra.mxu0 %v682
    %1389 = vmatpush.msra.mxu0 %v674
    %1390 = vmatpush.msra.mxu0 %v666
    %1391 = vmatmul.f32.gmra.mxu0 %v403
    %v1392 = vpop.f32.mrf.mxu0
    %v1393 = vadd.f32 %v1373, %v1392
    %1394 = vdwg.mxu0
    %1395 = vmatpush.msra.mxu0 %v914
    %1396 = vmatpush.msra.mxu0 %v906
    %1397 = vmatpush.msra.mxu0 %v898
    %1398 = vmatpush.msra.mxu0 %v890
    %1399 = vmatpush.msra.mxu0 %v882
    %1400 = vmatpush.msra.mxu0 %v874
    %1401 = vmatpush.msra.mxu0 %v866
    %1402 = vmatpush.msra.mxu0 %v858
    %1403 = vmatpush.msra.mxu0 %v850
    %1404 = vmatpush.msra.mxu0 %v842
    %1405 = vmatpush.msra.mxu0 %v834
    %1406 = vmatpush.msra.mxu0 %v826
    %1407 = vmatpush.msra.mxu0 %v818
    %1408 = vmatpush.msra.mxu0 %v810
    %1409 = vmatpush.msra.mxu0 %v802
    %1410 = vmatpush.msra.mxu0 %v794
    %1411 = vmatmul.f32.gmra.mxu0 %v404
    %v1412 = vpop.f32.mrf.mxu0
    %v1413 = vadd.f32 %v1393, %v1412
    %1414 = vdwg.mxu0
    %1415 = vmatpush.msra.mxu0 %v531
    %1416 = vmatpush.msra.mxu0 %v523
    %1417 = vmatpush.msra.mxu0 %v515
    %1418 = vmatpush.msra.mxu0 %v507
    %1419 = vmatpush.msra.mxu0 %v499
    %1420 = vmatpush.msra.mxu0 %v491
    %1421 = vmatpush.msra.mxu0 %v483
    %1422 = vmatpush.msra.mxu0 %v475
    %1423 = vmatpush.msra.mxu0 %v467
    %1424 = vmatpush.msra.mxu0 %v459
    %1425 = vmatpush.msra.mxu0 %v451
    %1426 = vmatpush.msra.mxu0 %v443
    %1427 = vmatpush.msra.mxu0 %v435
    %1428 = vmatpush.msra.mxu0 %v427
    %1429 = vmatpush.msra.mxu0 %v419
    %1430 = vmatpush.msra.mxu0 %v411
    %1431 = vmatmul.f32.gmra.mxu0 %v401
    %v1432 = vpop.f32.mrf.mxu0
    %v1433 = vadd.f32 %v925, %v1432
    %1434 = vdwg.mxu0
    %1435 = vmatpush.msra.mxu0 %v659
    %1436 = vmatpush.msra.mxu0 %v651
    %1437 = vmatpush.msra.mxu0 %v643
    %1438 = vmatpush.msra.mxu0 %v635
    %1439 = vmatpush.msra.mxu0 %v627
    %1440 = vmatpush.msra.mxu0 %v619
    %1441 = vmatpush.msra.mxu0 %v611
    %1442 = vmatpush.msra.mxu0 %v603
    %1443 = vmatpush.msra.mxu0 %v595
    %1444 = vmatpush.msra.mxu0 %v587
    %1445 = vmatpush.msra.mxu0 %v579
    %1446 = vmatpush.msra.mxu0 %v571
    %1447 = vmatpush.msra.mxu0 %v563
    %1448 = vmatpush.msra.mxu0 %v555
    %1449 = vmatpush.msra.mxu0 %v547
    %1450 = vmatpush.msra.mxu0 %v539
    %1451 = vmatmul.f32.gmra.mxu0 %v402
    %v1452 = vpop.f32.mrf.mxu0
    %v1453 = vadd.f32 %v1433, %v1452
    %1454 = vdwg.mxu0
    %1455 = vmatpush.msra.mxu0 %v787
    %1456 = vmatpush.msra.mxu0 %v779
    %1457 = vmatpush.msra.mxu0 %v771
    %1458 = vmatpush.msra.mxu0 %v763
    %1459 = vmatpush.msra.mxu0 %v755
    %1460 = vmatpush.msra.mxu0 %v747
    %1461 = vmatpush.msra.mxu0 %v739
    %1462 = vmatpush.msra.mxu0 %v731
    %1463 = vmatpush.msra.mxu0 %v723
    %1464 = vmatpush.msra.mxu0 %v715
    %1465 = vmatpush.msra.mxu0 %v707
    %1466 = vmatpush.msra.mxu0 %v699
    %1467 = vmatpush.msra.mxu0 %v691
    %1468 = vmatpush.msra.mxu0 %v683
    %1469 = vmatpush.msra.mxu0 %v675
    %1470 = vmatpush.msra.mxu0 %v667
    %1471 = vmatmul.f32.gmra.mxu0 %v403
    %v1472 = vpop.f32.mrf.mxu0
    %v1473 = vadd.f32 %v1453, %v1472
    %1474 = vdwg.mxu0
    %1475 = vmatpush.msra.mxu0 %v915
    %1476 = vmatpush.msra.mxu0 %v907
    %1477 = vmatpush.msra.mxu0 %v899
    %1478 = vmatpush.msra.mxu0 %v891
    %1479 = vmatpush.msra.mxu0 %v883
    %1480 = vmatpush.msra.mxu0 %v875
    %1481 = vmatpush.msra.mxu0 %v867
    %1482 = vmatpush.msra.mxu0 %v859
    %1483 = vmatpush.msra.mxu0 %v851
    %1484 = vmatpush.msra.mxu0 %v843
    %1485 = vmatpush.msra.mxu0 %v835
    %1486 = vmatpush.msra.mxu0 %v827
    %1487 = vmatpush.msra.mxu0 %v819
    %1488 = vmatpush.msra.mxu0 %v811
    %1489 = vmatpush.msra.mxu0 %v803
    %1490 = vmatpush.msra.mxu0 %v795
    %1491 = vmatmul.f32.gmra.mxu0 %v404
    %v1492 = vpop.f32.mrf.mxu0
    %v1493 = vadd.f32 %v1473, %v1492
    %1494 = vdwg.mxu0
    %1495 = vmatpush.msra.mxu0 %v532
    %1496 = vmatpush.msra.mxu0 %v524
    %1497 = vmatpush.msra.mxu0 %v516
    %1498 = vmatpush.msra.mxu0 %v508
    %1499 = vmatpush.msra.mxu0 %v500
    %1500 = vmatpush.msra.mxu0 %v492
    %1501 = vmatpush.msra.mxu0 %v484
    %1502 = vmatpush.msra.mxu0 %v476
    %1503 = vmatpush.msra.mxu0 %v468
    %1504 = vmatpush.msra.mxu0 %v460
    %1505 = vmatpush.msra.mxu0 %v452
    %1506 = vmatpush.msra.mxu0 %v444
    %1507 = vmatpush.msra.mxu0 %v436
    %1508 = vmatpush.msra.mxu0 %v428
    %1509 = vmatpush.msra.mxu0 %v420
    %1510 = vmatpush.msra.mxu0 %v412
    %1511 = vmatmul.f32.gmra.mxu0 %v401
    %v1512 = vpop.f32.mrf.mxu0
    %v1513 = vadd.f32 %v926, %v1512
    %1514 = vdwg.mxu0
    %1515 = vmatpush.msra.mxu0 %v660
    %1516 = vmatpush.msra.mxu0 %v652
    %1517 = vmatpush.msra.mxu0 %v644
    %1518 = vmatpush.msra.mxu0 %v636
    %1519 = vmatpush.msra.mxu0 %v628
    %1520 = vmatpush.msra.mxu0 %v620
    %1521 = vmatpush.msra.mxu0 %v612
    %1522 = vmatpush.msra.mxu0 %v604
    %1523 = vmatpush.msra.mxu0 %v596
    %1524 = vmatpush.msra.mxu0 %v588
    %1525 = vmatpush.msra.mxu0 %v580
    %1526 = vmatpush.msra.mxu0 %v572
    %1527 = vmatpush.msra.mxu0 %v564
    %1528 = vmatpush.msra.mxu0 %v556
    %1529 = vmatpush.msra.mxu0 %v548
    %1530 = vmatpush.msra.mxu0 %v540
    %1531 = vmatmul.f32.gmra.mxu0 %v402
    %v1532 = vpop.f32.mrf.mxu0
    %v1533 = vadd.f32 %v1513, %v1532
    %1534 = vdwg.mxu0
    %1535 = vmatpush.msra.mxu0 %v788
    %1536 = vmatpush.msra.mxu0 %v780
    %1537 = vmatpush.msra.mxu0 %v772
    %1538 = vmatpush.msra.mxu0 %v764
    %1539 = vmatpush.msra.mxu0 %v756
    %1540 = vmatpush.msra.mxu0 %v748
    %1541 = vmatpush.msra.mxu0 %v740
    %1542 = vmatpush.msra.mxu0 %v732
    %1543 = vmatpush.msra.mxu0 %v724
    %1544 = vmatpush.msra.mxu0 %v716
    %1545 = vmatpush.msra.mxu0 %v708
    %1546 = vmatpush.msra.mxu0 %v700
    %1547 = vmatpush.msra.mxu0 %v692
    %1548 = vmatpush.msra.mxu0 %v684
    %1549 = vmatpush.msra.mxu0 %v676
    %1550 = vmatpush.msra.mxu0 %v668
    %1551 = vmatmul.f32.gmra.mxu0 %v403
    %v1552 = vpop.f32.mrf.mxu0
    %v1553 = vadd.f32 %v1533, %v1552
    %1554 = vdwg.mxu0
    %1555 = vmatpush.msra.mxu0 %v916
    %1556 = vmatpush.msra.mxu0 %v908
    %1557 = vmatpush.msra.mxu0 %v900
    %1558 = vmatpush.msra.mxu0 %v892
    %1559 = vmatpush.msra.mxu0 %v884
    %1560 = vmatpush.msra.mxu0 %v876
    %1561 = vmatpush.msra.mxu0 %v868
    %1562 = vmatpush.msra.mxu0 %v860
    %1563 = vmatpush.msra.mxu0 %v852
    %1564 = vmatpush.msra.mxu0 %v844
    %1565 = vmatpush.msra.mxu0 %v836
    %1566 = vmatpush.msra.mxu0 %v828
    %1567 = vmatpush.msra.mxu0 %v820
    %1568 = vmatpush.msra.mxu0 %v812
    %1569 = vmatpush.msra.mxu0 %v804
    %1570 = vmatpush.msra.mxu0 %v796
    %1571 = vmatmul.f32.gmra.mxu0 %v404
    %v1572 = vpop.f32.mrf.mxu0
    %v1573 = vadd.f32 %v1553, %v1572
    %1574 = vdwg.mxu0
    %v1575 = vmax.f32 %v1013, 0.0
    %v1576 = vmax.f32 %v1093, 0.0
    %v1577 = vmax.f32 %v1173, 0.0
    %v1578 = vmax.f32 %v1253, 0.0
    %v1579 = vmax.f32 %v1333, 0.0
    %v1580 = vmax.f32 %v1413, 0.0
    %v1581 = vmax.f32 %v1493, 0.0
    %v1582 = vmax.f32 %v1573, 0.0
    %v1583 = vld [vmem:[#allocation7] sm:$0xff]
    %v1584 = vld [vmem:[#allocation7 + $0x8] sm:$0xff]
    %v1585 = vld [vmem:[#allocation7 + $0x10] sm:$0xff]
    %v1586 = vld [vmem:[#allocation7 + $0x18] sm:$0xff]
    %v1587 = vld [vmem:[#allocation7 + $0x20] sm:$0xff]
    %v1588 = vld [vmem:[#allocation7 + $0x28] sm:$0xff]
    %v1589 = vld [vmem:[#allocation7 + $0x30] sm:$0xff]
    %v1590 = vld [vmem:[#allocation7 + $0x38] sm:$0xff]
    %v1591 = vld [vmem:[#allocation7 + $0x40] sm:$0xff]
    %v1592 = vld [vmem:[#allocation7 + $0x48] sm:$0xff]
    %v1593 = vld [vmem:[#allocation7 + $0x50] sm:$0xff]
    %v1594 = vld [vmem:[#allocation7 + $0x58] sm:$0xff]
    %v1595 = vld [vmem:[#allocation7 + $0x60] sm:$0xff]
    %v1596 = vld [vmem:[#allocation7 + $0x68] sm:$0xff]
    %v1597 = vld [vmem:[#allocation7 + $0x70] sm:$0xff]
    %v1598 = vld [vmem:[#allocation7 + $0x78] sm:$0xff]
    %v1599 = vld [vmem:[#allocation7 + $0x80] sm:$0xff]
    %v1600 = vld [vmem:[#allocation7 + $0x88] sm:$0xff]
    %v1601 = vld [vmem:[#allocation7 + $0x90] sm:$0xff]
    %v1602 = vld [vmem:[#allocation7 + $0x98] sm:$0xff]
    %v1603 = vld [vmem:[#allocation7 + $0xa0] sm:$0xff]
    %v1604 = vld [vmem:[#allocation7 + $0xa8] sm:$0xff]
    %v1605 = vld [vmem:[#allocation7 + $0xb0] sm:$0xff]
    %v1606 = vld [vmem:[#allocation7 + $0xb8] sm:$0xff]
    %v1607 = vld [vmem:[#allocation7 + $0xc0] sm:$0xff]
    %v1608 = vld [vmem:[#allocation7 + $0xc8] sm:$0xff]
    %v1609 = vld [vmem:[#allocation7 + $0xd0] sm:$0xff]
    %v1610 = vld [vmem:[#allocation7 + $0xd8] sm:$0xff]
    %v1611 = vld [vmem:[#allocation7 + $0xe0] sm:$0xff]
    %v1612 = vld [vmem:[#allocation7 + $0xe8] sm:$0xff]
    %v1613 = vld [vmem:[#allocation7 + $0xf0] sm:$0xff]
    %v1614 = vld [vmem:[#allocation7 + $0xf8] sm:$0xff]
    %v1615 = vld [vmem:[#allocation7 + $0x100] sm:$0xff]
    %v1616 = vld [vmem:[#allocation7 + $0x108] sm:$0xff]
    %v1617 = vld [vmem:[#allocation7 + $0x110] sm:$0xff]
    %v1618 = vld [vmem:[#allocation7 + $0x118] sm:$0xff]
    %v1619 = vld [vmem:[#allocation7 + $0x120] sm:$0xff]
    %v1620 = vld [vmem:[#allocation7 + $0x128] sm:$0xff]
    %v1621 = vld [vmem:[#allocation7 + $0x130] sm:$0xff]
    %v1622 = vld [vmem:[#allocation7 + $0x138] sm:$0xff]
    %v1623 = vld [vmem:[#allocation7 + $0x140] sm:$0xff]
    %v1624 = vld [vmem:[#allocation7 + $0x148] sm:$0xff]
    %v1625 = vld [vmem:[#allocation7 + $0x150] sm:$0xff]
    %v1626 = vld [vmem:[#allocation7 + $0x158] sm:$0xff]
    %v1627 = vld [vmem:[#allocation7 + $0x160] sm:$0xff]
    %v1628 = vld [vmem:[#allocation7 + $0x168] sm:$0xff]
    %v1629 = vld [vmem:[#allocation7 + $0x170] sm:$0xff]
    %v1630 = vld [vmem:[#allocation7 + $0x178] sm:$0xff]
    %v1631 = vld [vmem:[#allocation7 + $0x180] sm:$0xff]
    %v1632 = vld [vmem:[#allocation7 + $0x188] sm:$0xff]
    %v1633 = vld [vmem:[#allocation7 + $0x190] sm:$0xff]
    %v1634 = vld [vmem:[#allocation7 + $0x198] sm:$0xff]
    %v1635 = vld [vmem:[#allocation7 + $0x1a0] sm:$0xff]
    %v1636 = vld [vmem:[#allocation7 + $0x1a8] sm:$0xff]
    %v1637 = vld [vmem:[#allocation7 + $0x1b0] sm:$0xff]
    %v1638 = vld [vmem:[#allocation7 + $0x1b8] sm:$0xff]
    %v1639 = vld [vmem:[#allocation7 + $0x1c0] sm:$0xff]
    %v1640 = vld [vmem:[#allocation7 + $0x1c8] sm:$0xff]
    %v1641 = vld [vmem:[#allocation7 + $0x1d0] sm:$0xff]
    %v1642 = vld [vmem:[#allocation7 + $0x1d8] sm:$0xff]
    %v1643 = vld [vmem:[#allocation7 + $0x1e0] sm:$0xff]
    %v1644 = vld [vmem:[#allocation7 + $0x1e8] sm:$0xff]
    %v1645 = vld [vmem:[#allocation7 + $0x1f0] sm:$0xff]
    %v1646 = vld [vmem:[#allocation7 + $0x1f8] sm:$0xff]
    %v1647 = vld [vmem:[#allocation7 + $0x200] sm:$0xff]
    %v1648 = vld [vmem:[#allocation7 + $0x208] sm:$0xff]
    %v1649 = vld [vmem:[#allocation7 + $0x210] sm:$0xff]
    %v1650 = vld [vmem:[#allocation7 + $0x218] sm:$0xff]
    %v1651 = vld [vmem:[#allocation7 + $0x220] sm:$0xff]
    %v1652 = vld [vmem:[#allocation7 + $0x228] sm:$0xff]
    %v1653 = vld [vmem:[#allocation7 + $0x230] sm:$0xff]
    %v1654 = vld [vmem:[#allocation7 + $0x238] sm:$0xff]
    %v1655 = vld [vmem:[#allocation7 + $0x240] sm:$0xff]
    %v1656 = vld [vmem:[#allocation7 + $0x248] sm:$0xff]
    %v1657 = vld [vmem:[#allocation7 + $0x250] sm:$0xff]
    %v1658 = vld [vmem:[#allocation7 + $0x258] sm:$0xff]
    %v1659 = vld [vmem:[#allocation7 + $0x260] sm:$0xff]
    %v1660 = vld [vmem:[#allocation7 + $0x268] sm:$0xff]
    %v1661 = vld [vmem:[#allocation7 + $0x270] sm:$0xff]
    %v1662 = vld [vmem:[#allocation7 + $0x278] sm:$0xff]
    %v1663 = vld [vmem:[#allocation7 + $0x280] sm:$0xff]
    %v1664 = vld [vmem:[#allocation7 + $0x288] sm:$0xff]
    %v1665 = vld [vmem:[#allocation7 + $0x290] sm:$0xff]
    %v1666 = vld [vmem:[#allocation7 + $0x298] sm:$0xff]
    %v1667 = vld [vmem:[#allocation7 + $0x2a0] sm:$0xff]
    %v1668 = vld [vmem:[#allocation7 + $0x2a8] sm:$0xff]
    %v1669 = vld [vmem:[#allocation7 + $0x2b0] sm:$0xff]
    %v1670 = vld [vmem:[#allocation7 + $0x2b8] sm:$0xff]
    %v1671 = vld [vmem:[#allocation7 + $0x2c0] sm:$0xff]
    %v1672 = vld [vmem:[#allocation7 + $0x2c8] sm:$0xff]
    %v1673 = vld [vmem:[#allocation7 + $0x2d0] sm:$0xff]
    %v1674 = vld [vmem:[#allocation7 + $0x2d8] sm:$0xff]
    %v1675 = vld [vmem:[#allocation7 + $0x2e0] sm:$0xff]
    %v1676 = vld [vmem:[#allocation7 + $0x2e8] sm:$0xff]
    %v1677 = vld [vmem:[#allocation7 + $0x2f0] sm:$0xff]
    %v1678 = vld [vmem:[#allocation7 + $0x2f8] sm:$0xff]
    %v1679 = vld [vmem:[#allocation7 + $0x300] sm:$0xff]
    %v1680 = vld [vmem:[#allocation7 + $0x308] sm:$0xff]
    %v1681 = vld [vmem:[#allocation7 + $0x310] sm:$0xff]
    %v1682 = vld [vmem:[#allocation7 + $0x318] sm:$0xff]
    %v1683 = vld [vmem:[#allocation7 + $0x320] sm:$0xff]
    %v1684 = vld [vmem:[#allocation7 + $0x328] sm:$0xff]
    %v1685 = vld [vmem:[#allocation7 + $0x330] sm:$0xff]
    %v1686 = vld [vmem:[#allocation7 + $0x338] sm:$0xff]
    %v1687 = vld [vmem:[#allocation7 + $0x340] sm:$0xff]
    %v1688 = vld [vmem:[#allocation7 + $0x348] sm:$0xff]
    %v1689 = vld [vmem:[#allocation7 + $0x350] sm:$0xff]
    %v1690 = vld [vmem:[#allocation7 + $0x358] sm:$0xff]
    %v1691 = vld [vmem:[#allocation7 + $0x360] sm:$0xff]
    %v1692 = vld [vmem:[#allocation7 + $0x368] sm:$0xff]
    %v1693 = vld [vmem:[#allocation7 + $0x370] sm:$0xff]
    %v1694 = vld [vmem:[#allocation7 + $0x378] sm:$0xff]
    %v1695 = vld [vmem:[#allocation7 + $0x380] sm:$0xff]
    %v1696 = vld [vmem:[#allocation7 + $0x388] sm:$0xff]
    %v1697 = vld [vmem:[#allocation7 + $0x390] sm:$0xff]
    %v1698 = vld [vmem:[#allocation7 + $0x398] sm:$0xff]
    %v1699 = vld [vmem:[#allocation7 + $0x3a0] sm:$0xff]
    %v1700 = vld [vmem:[#allocation7 + $0x3a8] sm:$0xff]
    %v1701 = vld [vmem:[#allocation7 + $0x3b0] sm:$0xff]
    %v1702 = vld [vmem:[#allocation7 + $0x3b8] sm:$0xff]
    %v1703 = vld [vmem:[#allocation7 + $0x3c0] sm:$0xff]
    %v1704 = vld [vmem:[#allocation7 + $0x3c8] sm:$0xff]
    %v1705 = vld [vmem:[#allocation7 + $0x3d0] sm:$0xff]
    %v1706 = vld [vmem:[#allocation7 + $0x3d8] sm:$0xff]
    %v1707 = vld [vmem:[#allocation7 + $0x3e0] sm:$0xff]
    %v1708 = vld [vmem:[#allocation7 + $0x3e8] sm:$0xff]
    %v1709 = vld [vmem:[#allocation7 + $0x3f0] sm:$0xff]
    %v1710 = vld [vmem:[#allocation7 + $0x3f8] sm:$0xff]
    %v1711 = vld [vmem:[%s6] sm:$0x1]
    %v1713 = vperm.slane %v1711, 0
    %1715 = vmatpush.msra.mxu0 %v1598
    %1716 = vmatpush.msra.mxu0 %v1597
    %1717 = vmatpush.msra.mxu0 %v1596
    %1718 = vmatpush.msra.mxu0 %v1595
    %1719 = vmatpush.msra.mxu0 %v1594
    %1720 = vmatpush.msra.mxu0 %v1593
    %1721 = vmatpush.msra.mxu0 %v1592
    %1722 = vmatpush.msra.mxu0 %v1591
    %1723 = vmatpush.msra.mxu0 %v1590
    %1724 = vmatpush.msra.mxu0 %v1589
    %1725 = vmatpush.msra.mxu0 %v1588
    %1726 = vmatpush.msra.mxu0 %v1587
    %1727 = vmatpush.msra.mxu0 %v1586
    %1728 = vmatpush.msra.mxu0 %v1585
    %1729 = vmatpush.msra.mxu0 %v1584
    %1730 = vmatpush.msra.mxu0 %v1583
    %1731 = vmatmul.f32.gmra.mxu0 %v1575
    %v1732 = vpop.f32.mrf.mxu0
    %v1733 = vadd.f32 %v1713, %v1732
    %1734 = vdwg.mxu0
    %1735 = vmatpush.msra.mxu0 %v1614
    %1736 = vmatpush.msra.mxu0 %v1613
    %1737 = vmatpush.msra.mxu0 %v1612
    %1738 = vmatpush.msra.mxu0 %v1611
    %1739 = vmatpush.msra.mxu0 %v1610
    %1740 = vmatpush.msra.mxu0 %v1609
    %1741 = vmatpush.msra.mxu0 %v1608
    %1742 = vmatpush.msra.mxu0 %v1607
    %1743 = vmatpush.msra.mxu0 %v1606
    %1744 = vmatpush.msra.mxu0 %v1605
    %1745 = vmatpush.msra.mxu0 %v1604
    %1746 = vmatpush.msra.mxu0 %v1603
    %1747 = vmatpush.msra.mxu0 %v1602
    %1748 = vmatpush.msra.mxu0 %v1601
    %1749 = vmatpush.msra.mxu0 %v1600
    %1750 = vmatpush.msra.mxu0 %v1599
    %1751 = vmatmul.f32.gmra.mxu0 %v1576
    %v1752 = vpop.f32.mrf.mxu0
    %v1753 = vadd.f32 %v1733, %v1752
    %1754 = vdwg.mxu0
    %1755 = vmatpush.msra.mxu0 %v1630
    %1756 = vmatpush.msra.mxu0 %v1629
    %1757 = vmatpush.msra.mxu0 %v1628
    %1758 = vmatpush.msra.mxu0 %v1627
    %1759 = vmatpush.msra.mxu0 %v1626
    %1760 = vmatpush.msra.mxu0 %v1625
    %1761 = vmatpush.msra.mxu0 %v1624
    %1762 = vmatpush.msra.mxu0 %v1623
    %1763 = vmatpush.msra.mxu0 %v1622
    %1764 = vmatpush.msra.mxu0 %v1621
    %1765 = vmatpush.msra.mxu0 %v1620
    %1766 = vmatpush.msra.mxu0 %v1619
    %1767 = vmatpush.msra.mxu0 %v1618
    %1768 = vmatpush.msra.mxu0 %v1617
    %1769 = vmatpush.msra.mxu0 %v1616
    %1770 = vmatpush.msra.mxu0 %v1615
    %1771 = vmatmul.f32.gmra.mxu0 %v1577
    %v1772 = vpop.f32.mrf.mxu0
    %v1773 = vadd.f32 %v1753, %v1772
    %1774 = vdwg.mxu0
    %1775 = vmatpush.msra.mxu0 %v1646
    %1776 = vmatpush.msra.mxu0 %v1645
    %1777 = vmatpush.msra.mxu0 %v1644
    %1778 = vmatpush.msra.mxu0 %v1643
    %1779 = vmatpush.msra.mxu0 %v1642
    %1780 = vmatpush.msra.mxu0 %v1641
    %1781 = vmatpush.msra.mxu0 %v1640
    %1782 = vmatpush.msra.mxu0 %v1639
    %1783 = vmatpush.msra.mxu0 %v1638
    %1784 = vmatpush.msra.mxu0 %v1637
    %1785 = vmatpush.msra.mxu0 %v1636
    %1786 = vmatpush.msra.mxu0 %v1635
    %1787 = vmatpush.msra.mxu0 %v1634
    %1788 = vmatpush.msra.mxu0 %v1633
    %1789 = vmatpush.msra.mxu0 %v1632
    %1790 = vmatpush.msra.mxu0 %v1631
    %1791 = vmatmul.f32.gmra.mxu0 %v1578
    %v1792 = vpop.f32.mrf.mxu0
    %v1793 = vadd.f32 %v1773, %v1792
    %1794 = vdwg.mxu0
    %1795 = vmatpush.msra.mxu0 %v1662
    %1796 = vmatpush.msra.mxu0 %v1661
    %1797 = vmatpush.msra.mxu0 %v1660
    %1798 = vmatpush.msra.mxu0 %v1659
    %1799 = vmatpush.msra.mxu0 %v1658
    %1800 = vmatpush.msra.mxu0 %v1657
    %1801 = vmatpush.msra.mxu0 %v1656
    %1802 = vmatpush.msra.mxu0 %v1655
    %1803 = vmatpush.msra.mxu0 %v1654
    %1804 = vmatpush.msra.mxu0 %v1653
    %1805 = vmatpush.msra.mxu0 %v1652
    %1806 = vmatpush.msra.mxu0 %v1651
    %1807 = vmatpush.msra.mxu0 %v1650
    %1808 = vmatpush.msra.mxu0 %v1649
    %1809 = vmatpush.msra.mxu0 %v1648
    %1810 = vmatpush.msra.mxu0 %v1647
    %1811 = vmatmul.f32.gmra.mxu0 %v1579
    %v1812 = vpop.f32.mrf.mxu0
    %v1813 = vadd.f32 %v1793, %v1812
    %1814 = vdwg.mxu0
    %1815 = vmatpush.msra.mxu0 %v1678
    %1816 = vmatpush.msra.mxu0 %v1677
    %1817 = vmatpush.msra.mxu0 %v1676
    %1818 = vmatpush.msra.mxu0 %v1675
    %1819 = vmatpush.msra.mxu0 %v1674
    %1820 = vmatpush.msra.mxu0 %v1673
    %1821 = vmatpush.msra.mxu0 %v1672
    %1822 = vmatpush.msra.mxu0 %v1671
    %1823 = vmatpush.msra.mxu0 %v1670
    %1824 = vmatpush.msra.mxu0 %v1669
    %1825 = vmatpush.msra.mxu0 %v1668
    %1826 = vmatpush.msra.mxu0 %v1667
    %1827 = vmatpush.msra.mxu0 %v1666
    %1828 = vmatpush.msra.mxu0 %v1665
    %1829 = vmatpush.msra.mxu0 %v1664
    %1830 = vmatpush.msra.mxu0 %v1663
    %1831 = vmatmul.f32.gmra.mxu0 %v1580
    %v1832 = vpop.f32.mrf.mxu0
    %v1833 = vadd.f32 %v1813, %v1832
    %1834 = vdwg.mxu0
    %1835 = vmatpush.msra.mxu0 %v1694
    %1836 = vmatpush.msra.mxu0 %v1693
    %1837 = vmatpush.msra.mxu0 %v1692
    %1838 = vmatpush.msra.mxu0 %v1691
    %1839 = vmatpush.msra.mxu0 %v1690
    %1840 = vmatpush.msra.mxu0 %v1689
    %1841 = vmatpush.msra.mxu0 %v1688
    %1842 = vmatpush.msra.mxu0 %v1687
    %1843 = vmatpush.msra.mxu0 %v1686
    %1844 = vmatpush.msra.mxu0 %v1685
    %1845 = vmatpush.msra.mxu0 %v1684
    %1846 = vmatpush.msra.mxu0 %v1683
    %1847 = vmatpush.msra.mxu0 %v1682
    %1848 = vmatpush.msra.mxu0 %v1681
    %1849 = vmatpush.msra.mxu0 %v1680
    %1850 = vmatpush.msra.mxu0 %v1679
    %1851 = vmatmul.f32.gmra.mxu0 %v1581
    %v1852 = vpop.f32.mrf.mxu0
    %v1853 = vadd.f32 %v1833, %v1852
    %1854 = vdwg.mxu0
    %1855 = vmatpush.msra.mxu0 %v1710
    %1856 = vmatpush.msra.mxu0 %v1709
    %1857 = vmatpush.msra.mxu0 %v1708
    %1858 = vmatpush.msra.mxu0 %v1707
    %1859 = vmatpush.msra.mxu0 %v1706
    %1860 = vmatpush.msra.mxu0 %v1705
    %1861 = vmatpush.msra.mxu0 %v1704
    %1862 = vmatpush.msra.mxu0 %v1703
    %1863 = vmatpush.msra.mxu0 %v1702
    %1864 = vmatpush.msra.mxu0 %v1701
    %1865 = vmatpush.msra.mxu0 %v1700
    %1866 = vmatpush.msra.mxu0 %v1699
    %1867 = vmatpush.msra.mxu0 %v1698
    %1868 = vmatpush.msra.mxu0 %v1697
    %1869 = vmatpush.msra.mxu0 %v1696
    %1870 = vmatpush.msra.mxu0 %v1695
    %1871 = vmatmul.f32.gmra.mxu0 %v1582
    %v1872 = vpop.f32.mrf.mxu0
    %v1873 = vadd.f32 %v1853, %v1872
    %1874 = vdwg.mxu0
    %v1875 = vmax.f32 %v1873, 0.0
    %v1876 = vld [vmem:[#allocation8] sm:$0xff]
    %v1877 = vld [vmem:[#allocation8 + $0x8] sm:$0xff]
    %v1878 = vld [vmem:[#allocation8 + $0x10] sm:$0xff]
    %v1879 = vld [vmem:[#allocation8 + $0x18] sm:$0xff]
    %v1880 = vld [vmem:[#allocation8 + $0x20] sm:$0xff]
    %v1881 = vld [vmem:[#allocation8 + $0x28] sm:$0xff]
    %v1882 = vld [vmem:[#allocation8 + $0x30] sm:$0xff]
    %v1883 = vld [vmem:[#allocation8 + $0x38] sm:$0xff]
    %v1884 = vld [vmem:[%s8] sm:$0x1]
    %v1886 = vperm.slane %v1884, 0
    %vm1888 = vcmask 523264
    %v1890 = vsel %vm1888, %v1875, 0
    %1892 = vmatpush.msra.mxu0 0.0
    %1893 = vmatpush.msra.mxu0 0.0
    %1894 = vmatpush.msra.mxu0 0.0
    %1895 = vmatpush.msra.mxu0 0.0
    %1896 = vmatpush.msra.mxu0 0.0
    %1897 = vmatpush.msra.mxu0 0.0
    %1898 = vmatpush.msra.mxu0 0.0
    %1899 = vmatpush.msra.mxu0 0.0
    %1900 = vmatpush.msra.mxu0 %v1883
    %1901 = vmatpush.msra.mxu0 %v1882
    %1902 = vmatpush.msra.mxu0 %v1881
    %1903 = vmatpush.msra.mxu0 %v1880
    %1904 = vmatpush.msra.mxu0 %v1879
    %1905 = vmatpush.msra.mxu0 %v1878
    %1906 = vmatpush.msra.mxu0 %v1877
    %1907 = vmatpush.msra.mxu0 %v1876
    %1908 = vmatmul.f32.gmra.mxu0 %v1890
    %v1909 = vpop.f32.mrf.mxu0
    %v1910 = vadd.f32 %v1886, %v1909
    %1911 = vdwg.mxu0
    %v1912 = vmax.f32 %v1910, 0.0
    %vm1913 = vcmask 254976
    %v1914 = vsel %vm1913, %v1912, -inf
    %1915 = vmax.xlane.f32.xlu0 %v1914
    %v1916 = vpop.xlane.xlu0 %1915
    %v1917 = vsub.f32 %v1912, %v1916
    %v1918 = vmul.f32 %v1917, 1.442695
    %v1919 = vpow.pop %v1918
    %v1920 = vsel %vm1913, %v1919, 0.0
    %1921 = vadd.xlane.f32.xlu0 %v1920
    %v1922 = vpop.xlane.xlu0 %1921
    %v1923 = vrcp.pop %v1922
    %v1924 = vmul.f32 %v1922, %v1923
    %v1925 = vsub.f32 1.0, %v1924
    %v1926 = vmul.f32 %v1923, %v1925
    %v1927 = vadd.f32 %v1923, %v1926
    %vm1928 = vweird.f32 %v1922
    %vm1929 = vweird.f32 %v1923
    %vm1930 = vmor %vm1928, %vm1929
    %v1931 = vsel %vm1930, %v1923, %v1927
    %v1932 = vand.u32 2147483647, %v1922
    %vm1933 = vcmp.eq.f32.partialorder %v1932, 8.507059e+37
    %v1934 = vand.u32 %v1922, 2147483648
    %v1935 = vor.u32 1.1754944e-38, %v1934
    %v1936 = vsel %vm1933, %v1935, %v1931
    %v1937 = vmul.f32 %v1919, %v1936
    %1938 = vst.msk [vmem:[#allocation10] sm:$0x3] %vm1913, %v1937
    // Predicated region
    $region54: #{chess_policy_forward.1} parent=1 // pred_check
      _
    $region55: #{chess_policy_forward.1} parent=1 // pred_check_branch
      %1940 = sbr.rel (0) target = $region57
    $region56: #{chess_policy_forward.1} parent=1 // pred_region
      %1942 = vsyncadd [#allocation4], 0
      %s1944 = sshll.u32 [#allocation10], 4
      %s1945 = int_to_ptr.vmem [resolvable:$true] %s1944
      %s1946 = sshll.u32 %s9, 4
      %s1947 = int_to_ptr.hbm [resolvable:$true] %s1946
      %1949 = dma.vmem_to_hbm [thread:$0]  %s1945, 32, %s1947, [#allocation4]
    $region57: #{chess_policy_forward.1} parent=1 // pred_fallthru
      _
    // Predicated region
    $region58: #{chess_policy_forward.1} parent=1 // pred_check
      _
    $region59: #{chess_policy_forward.1} parent=1 // pred_check_branch
      %1951 = sbr.rel (0) target = $region61
    $region60: #{chess_policy_forward.1} parent=1 // pred_region
      %1953 = dma.done [#allocation4], 32
    $region61: #{chess_policy_forward.1} parent=1 // pred_fallthru
      _
    %1954 = vsyncpa [#allocation3], 1
    %1955 = vsyncpa [#allocation6], 1
    %1956 = vsyncpa [#allocation9], 1
    %1957 = vsyncpa [#allocation4], 1

</llo_original>
